<compile_context>
chip_gen: v6e
topology: v6e:2x2x1
jax: 0.10.0
libtpu: 0.0.40
codegen_flags: <defaults>
</compile_context>

<pallas_src>
import functools
import numpy as np
import jax
import jax.numpy as jnp
from jax.experimental import pallas as pl
from jax.experimental.pallas import tpu as pltpu

_LANE = 128
_VMEM_LIMIT = 32 * 1024 * 1024


# ------------------------------ Pallas kernels ------------------------------ #
def _conv_relu_stats_kernel(x_ref, w_ref, b_ref, y_ref, sum_ref, sq_ref, *,
                            ksize, row_block, width, cin_p, apply_relu):
    """Conv (ksize x ksize) + bias + optional ReLU for one row band of one image,
    plus accumulation of per-channel BN sum / sum-of-squares across bands."""
    j = pl.program_id(1)                      # row-band index within the image
    th, w = row_block, width
    cout_p = y_ref.shape[-1]
    row0 = j * th

    # ksize*ksize accumulated MXU matmuls over shifted taps (no HBM im2col).
    acc = jnp.zeros((th * w, cout_p), jnp.float32)
    for dy in range(ksize):
        band = x_ref[pl.ds(row0 + dy, th), :, :]          # (th, W+2p, cin_p)
        for dx in range(ksize):
            tap = band[:, dx:dx + w, :].reshape(th * w, cin_p)
            k = dy * ksize + dx
            wk = w_ref[k * cin_p:(k + 1) * cin_p, :]       # (cin_p, cout_p)
            acc = acc + jnp.dot(tap, wk, preferred_element_type=jnp.float32)

    y = acc + b_ref[...]
    if apply_relu:
        y = jnp.maximum(y, 0.0)
    y_ref[...] = y                                          # pre-BN activation (f32)

    # Phase-1 BatchNorm statistics, accumulated across the "arbitrary" band axis.
    @pl.when(j == 0)
    def _init():
        sum_ref[...] = jnp.zeros_like(sum_ref)
        sq_ref[...] = jnp.zeros_like(sq_ref)

    s1 = jnp.sum(y, axis=0, keepdims=True)                  # (1, cout_p)
    s2 = jnp.sum(y * y, axis=0, keepdims=True)
    sum_ref[...] += jnp.broadcast_to(s1, sum_ref.shape)
    sq_ref[...] += jnp.broadcast_to(s2, sq_ref.shape)


def _bn_affine_kernel(y_ref, scale_ref, shift_ref, o_ref):
    # Phase-2 BatchNorm: one FMA per element with precomputed scale/shift.
    o_ref[...] = (y_ref[...] * scale_ref[...] + shift_ref[...]).astype(o_ref.dtype)


# --------------------------------- helpers ---------------------------------- #
def _round_up(v, m):
    return ((v + m - 1) // m) * m


def _pick_row_block(H, W, target_rows=2048):
    best = 1
    for th in range(1, H + 1):
        if H % th == 0 and th * W <= target_rows:
            best = th
    return best


def _pick_m_block(M, target_rows=4096):
    cands = [tm for tm in range(8, min(M, target_rows) + 1, 8) if M % tm == 0]
    return max(cands) if cands else M


def _pad_last(x, c_to):
    c = x.shape[-1]
    if c == c_to:
        return x
    return jnp.pad(x, [(0, 0)] * (x.ndim - 1) + [(0, c_to - c)])


def _pad_conv_params(p, cin_p, cout_p):
    w, b, g, bt = p
    _, _, cin, cout = w.shape
    w_p = jnp.pad(w, ((0, 0), (0, 0), (0, cin_p - cin), (0, cout_p - cout)))
    b_p = jnp.pad(b, (0, cout_p - cout))
    g_p = jnp.pad(g, (0, cout_p - cout))     # zeros -> padded channels stay 0
    bt_p = jnp.pad(bt, (0, cout_p - cout))
    return w_p, b_p, g_p, bt_p


# ------------------------------- one layer ---------------------------------- #
def _conv_relu_bn_layer(a_nhwc, w4, b, gamma, beta, *, ksize, apply_relu,
                        row_block, compute_dtype, out_dtype, eps=1e-5):
    N, H, W, cin_p = a_nhwc.shape
    cout_p = w4.shape[-1]
    pad = ksize // 2
    th = row_block if H % row_block == 0 else _pick_row_block(H, W)
    hb = H // th
    mt = th * W
    M = N * H * W
    Kp = ksize * ksize * cin_p

    x_p = a_nhwc.astype(compute_dtype)
    if pad:
        x_p = jnp.pad(x_p, ((0, 0), (pad, pad), (pad, pad), (0, 0)))
    Hp, Wp = H + 2 * pad, W + 2 * pad

    w2d = w4.reshape(Kp, cout_p).astype(compute_dtype)
    b2d = b.reshape(1, cout_p).astype(jnp.float32)

    kernel = functools.partial(_conv_relu_stats_kernel, ksize=ksize,
                               row_block=th, width=W, cin_p=cin_p,
                               apply_relu=apply_relu)
    itemsize = jnp.dtype(compute_dtype).itemsize
    conv_cost = pl.CostEstimate(
        flops=2 * M * Kp * cout_p,
        transcendentals=0,
        bytes_accessed=(x_p.size * itemsize + w2d.size * itemsize
                        + M * cout_p * 4 + 2 * N * 8 * cout_p * 4))

    y2d, part_sum, part_sq = pl.pallas_call(
        kernel,
        out_shape=(jax.ShapeDtypeStruct((M, cout_p), jnp.float32),
                   jax.ShapeDtypeStruct((N, 8, cout_p), jnp.float32),
                   jax.ShapeDtypeStruct((N, 8, cout_p), jnp.float32)),
        grid_spec=pltpu.PrefetchScalarGridSpec(
            num_scalar_prefetch=0,
            grid=(N, hb),
            in_specs=[
                # Padded image n: constant index over j -> fetched once per image.
                pl.BlockSpec((None, Hp, Wp, cin_p), lambda n, j: (n, 0, 0, 0)),
                pl.BlockSpec((Kp, cout_p), lambda n, j: (0, 0)),
                pl.BlockSpec((1, cout_p), lambda n, j: (0, 0)),
            ],
            out_specs=[
                pl.BlockSpec((mt, cout_p), lambda n, j: (n * hb + j, 0)),
                pl.BlockSpec((None, 8, cout_p), lambda n, j: (n, 0, 0)),
                pl.BlockSpec((None, 8, cout_p), lambda n, j: (n, 0, 0)),
            ]),
        compiler_params=pltpu.CompilerParams(
            dimension_semantics=("parallel", "arbitrary"),
            vmem_limit_bytes=_VMEM_LIMIT),
        cost_estimate=conv_cost,
    )(x_p, w2d, b2d)

    # Combine per-image partials -> per-channel BN scale/shift (tiny glue op).
    total = jnp.sum(part_sum[:, 0, :], axis=0)
    total_sq = jnp.sum(part_sq[:, 0, :], axis=0)
    mean = total / M
    var = jnp.maximum(total_sq / M - mean * mean, 0.0)     # biased variance
    inv = jax.lax.rsqrt(var + eps)
    scale = (gamma * inv).reshape(1, cout_p).astype(jnp.float32)
    shift = (beta - mean * gamma * inv).reshape(1, cout_p).astype(jnp.float32)

    tm = _pick_m_block(M)
    out_itemsize = jnp.dtype(out_dtype).itemsize
    a2d = pl.pallas_call(
        _bn_affine_kernel,
        out_shape=jax.ShapeDtypeStruct((M, cout_p), out_dtype),
        grid_spec=pltpu.PrefetchScalarGridSpec(
            num_scalar_prefetch=0,
            grid=(M // tm,),
            in_specs=[pl.BlockSpec((tm, cout_p), lambda i: (i, 0)),
                      pl.BlockSpec((1, cout_p), lambda i: (0, 0)),
                      pl.BlockSpec((1, cout_p), lambda i: (0, 0))],
            out_specs=pl.BlockSpec((tm, cout_p), lambda i: (i, 0))),
        compiler_params=pltpu.CompilerParams(
            dimension_semantics=("parallel",),
            vmem_limit_bytes=_VMEM_LIMIT),
        cost_estimate=pl.CostEstimate(
            flops=2 * M * cout_p, transcendentals=0,
            bytes_accessed=M * cout_p * (4 + out_itemsize) + 2 * cout_p * 4),
    )(y2d, scale, shift)

    return a2d.reshape(N, H, W, cout_p)


# ------------------------------ full forward -------------------------------- #
def infoseg_forward(x_nchw, params, nConv, *, compute_dtype=jnp.bfloat16,
                    row_block=None):
    """x_nchw: (N, Cin, H, W) float32 -> (N, nChannel, H, W) float32."""
    N, Cin, H, W = x_nchw.shape
    nChannel = params["conv1"][0].shape[-1]
    Cp = _round_up(max(nChannel, Cin), _LANE)
    if row_block is None:
        row_block = _pick_row_block(H, W)

    x = jnp.transpose(x_nchw, (0, 2, 3, 1))        # NHWC
    a = _pad_last(x, Cp)

    w, b, g, bt = _pad_conv_params(params["conv1"], Cp, Cp)
    a = _conv_relu_bn_layer(a, w, b, g, bt, ksize=3, apply_relu=True,
                            row_block=row_block, compute_dtype=compute_dtype,
                            out_dtype=compute_dtype)
    for i in range(nConv - 1):
        w, b, g, bt = _pad_conv_params(params["conv2"][i], Cp, Cp)
        a = _conv_relu_bn_layer(a, w, b, g, bt, ksize=3, apply_relu=True,
                                row_block=row_block, compute_dtype=compute_dtype,
                                out_dtype=compute_dtype)
    w, b, g, bt = _pad_conv_params(params["conv3"], Cp, Cp)
    a = _conv_relu_bn_layer(a, w, b, g, bt, ksize=1, apply_relu=False,
                            row_block=row_block, compute_dtype=compute_dtype,
                            out_dtype=jnp.float32)

    a = a[..., :nChannel]
    return jnp.transpose(a, (0, 3, 1, 2))          # back to NCHW


# --------------------------- pure-JAX reference ------------------------------ #
def _ref_conv(x, w, b, padding, conv_dtype):
    y = jax.lax.conv_general_dilated(
        x.astype(conv_dtype), w.astype(conv_dtype),
        window_strides=(1, 1), padding=padding,
        dimension_numbers=("NHWC", "HWIO", "NHWC"),
        preferred_element_type=jnp.float32)
    return y + b


def _ref_bn(x, g, bt, eps=1e-5):
    mean = jnp.mean(x, axis=(0, 1, 2), keepdims=True)
    var = jnp.mean(jnp.square(x - mean), axis=(0, 1, 2), keepdims=True)
    return (x - mean) * jax.lax.rsqrt(var + eps) * g + bt


def infoseg_reference(x_nchw, params, nConv, conv_dtype=jnp.float32):
    x = jnp.transpose(x_nchw, (0, 2, 3, 1))
    w, b, g, bt = params["conv1"]
    x = _ref_bn(jax.nn.relu(_ref_conv(x, w, b, "SAME", conv_dtype)), g, bt)
    for i in range(nConv - 1):
        w, b, g, bt = params["conv2"][i]
        x = _ref_bn(jax.nn.relu(_ref_conv(x, w, b, "SAME", conv_dtype)), g, bt)
    w, b, g, bt = params["conv3"]
    x = _ref_bn(_ref_conv(x, w, b, "VALID", conv_dtype), g, bt)
    return jnp.transpose(x, (0, 3, 1, 2))


# -------------------------------- param init --------------------------------- #
def _make_conv_params(key, kh, kw, cin, cout):
    k1, k2 = jax.random.split(key)
    bound = 1.0 / np.sqrt(kh * kw * cin)
    w = jax.random.uniform(k1, (kh, kw, cin, cout), jnp.float32, -bound, bound)
    b = jax.random.uniform(k2, (cout,), jnp.float32, -bound, bound)
    gamma = jnp.ones((cout,), jnp.float32)   # BatchNorm2d default weight
    beta = jnp.zeros((cout,), jnp.float32)   # BatchNorm2d default bias
    return (w, b, gamma, beta)


def init_params(key, input_dim, nChannel, nConv):
    keys = jax.random.split(key, nConv + 1)
    return {
        "conv1": _make_conv_params(keys[0], 3, 3, input_dim, nChannel),
        "conv2": [_make_conv_params(keys[1 + i], 3, 3, nChannel, nChannel)
                  for i in range(nConv - 1)],
        "conv3": _make_conv_params(keys[nConv], 1, 1, nChannel, nChannel),
    }


# ----------------------------------- main ------------------------------------ #
if __name__ == "__main__":
    input_dim, nChannel, nConv = 4, 8, 3
    N, H, W = 2, 16, 16

    key = jax.random.PRNGKey(0)
    k_x, k_p = jax.random.split(key)
    x = jax.random.normal(k_x, (N, input_dim, H, W), jnp.float32)
    params = init_params(k_p, input_dim, nChannel, nConv)

    ref_f32 = jax.block_until_ready(
        infoseg_reference(x, params, nConv, conv_dtype=jnp.float32))

    # 1) f32 compute path: exact semantic check against the f32 reference.
    #    row_block=8 forces 2 row-bands per image -> exercises the cross-tile
    #    two-phase BatchNorm accumulation.
    out_f32 = jax.block_until_ready(
        infoseg_forward(x, params, nConv, compute_dtype=jnp.float32,
                        row_block=8))
    np.testing.assert_allclose(np.asarray(out_f32), np.asarray(ref_f32),
                               rtol=2e-3, atol=2e-3)

    # 2) bf16 fast path (default): tight check against a precision-matched
    #    reference (same bf16 conv-input policy), plus a coarse sanity bound
    #    against the full-f32 reference (bf16 rounding gives ~1% deviations).
    out_bf16 = jax.block_until_ready(
        infoseg_forward(x, params, nConv, compute_dtype=jnp.bfloat16,
                        row_block=8))
    ref_bf16 = jax.block_until_ready(
        infoseg_reference(x, params, nConv, conv_dtype=jnp.bfloat16))
    np.testing.assert_allclose(np.asarray(out_bf16), np.asarray(ref_bf16),
                               rtol=1e-2, atol=1e-2)
    np.testing.assert_allclose(np.asarray(out_bf16), np.asarray(ref_f32),
                               rtol=1e-1, atol=1e-1)

    assert out_bf16.shape == (N, nChannel, H, W)
    print("KERNEL_OK")
</pallas_src>

<mosaic_0001>
module attributes {stable_mosaic.version = 11 : i64} {
  func.func @_conv_relu_stats_kernel(%arg0: i32, %arg1: i32, %arg2: memref<1x18x18x128xf32, #tpu.memory_space<vmem>>, %arg3: memref<1152x128xf32, #tpu.memory_space<vmem>>, %arg4: memref<1x128xf32, #tpu.memory_space<vmem>>, %arg5: memref<128x128xf32, #tpu.memory_space<vmem>>, %arg6: memref<1x8x128xf32, #tpu.memory_space<vmem>>, %arg7: memref<1x8x128xf32, #tpu.memory_space<vmem>>) attributes {dimension_semantics = [#tpu.dimension_semantics<parallel>, #tpu.dimension_semantics<arbitrary>], iteration_bounds = array<i64: 2, 2>, scalar_prefetch = 0 : i64, scratch_operands = 0 : i64, tpu.core_type = #tpu.core_type<tc>, window_params = [{transform_indices = @transform_0, window_bounds = array<i64: 1, 18, 18, 128>}, {pipeline_mode = #tpu.pipeline_mode<synchronous>, transform_indices = @transform_1, window_bounds = array<i64: 1152, 128>}, {pipeline_mode = #tpu.pipeline_mode<synchronous>, transform_indices = @transform_2, window_bounds = array<i64: 1, 128>}, {transform_indices = @transform_3, window_bounds = array<i64: 128, 128>}, {transform_indices = @transform_4, window_bounds = array<i64: 1, 8, 128>}, {transform_indices = @transform_5, window_bounds = array<i64: 1, 8, 128>}]} {
    %c8_i32 = arith.constant 8 : i32
    %0 = arith.muli %arg1, %c8_i32 : i32
    %cst = arith.constant 0.000000e+00 : f32
    %1 = vector.broadcast %cst : f32 to vector<128x128xf32>
    %c0_i32 = arith.constant 0 : i32
    %2 = arith.addi %0, %c0_i32 : i32
    %c0 = arith.constant 0 : index
    %3 = arith.index_cast %2 : i32 to index
    %c0_0 = arith.constant 0 : index
    %c0_1 = arith.constant 0 : index
    %4 = vector.load %arg2[%c0, %3, %c0_0, %c0_1] : memref<1x18x18x128xf32, #tpu.memory_space<vmem>>, vector<1x8x18x128xf32>
    %5 = vector.shape_cast %4 : vector<1x8x18x128xf32> to vector<8x18x128xf32>
    %6 = vector.extract_strided_slice %5 {offsets = [0, 0, 0], sizes = [8, 16, 128], strides = [1, 1, 1]} : vector<8x18x128xf32> to vector<8x16x128xf32>
    %7 = vector.shape_cast %6 : vector<8x16x128xf32> to vector<128x128xf32>
    %c0_2 = arith.constant 0 : index
    %c0_3 = arith.constant 0 : index
    %8 = vector.load %arg3[%c0_2, %c0_3] : memref<1152x128xf32, #tpu.memory_space<vmem>>, vector<128x128xf32>
    %cst_4 = arith.constant dense<0.000000e+00> : vector<128x128xf32>
    %9 = tpu.matmul %7, %8, %cst_4 {dimension_numbers = #tpu.dot_dimension_numbers<[1], [0], [0], [1], [0, 0, 1, 1], [], []>} : vector<128x128xf32>, vector<128x128xf32>, vector<128x128xf32> -> vector<128x128xf32>
    %10 = arith.addf %1, %9 : vector<128x128xf32>
    %11 = vector.extract_strided_slice %5 {offsets = [0, 1, 0], sizes = [8, 16, 128], strides = [1, 1, 1]} : vector<8x18x128xf32> to vector<8x16x128xf32>
    %12 = vector.shape_cast %11 : vector<8x16x128xf32> to vector<128x128xf32>
    %c128 = arith.constant 128 : index
    %c0_5 = arith.constant 0 : index
    %13 = vector.load %arg3[%c128, %c0_5] : memref<1152x128xf32, #tpu.memory_space<vmem>>, vector<128x128xf32>
    %cst_6 = arith.constant dense<0.000000e+00> : vector<128x128xf32>
    %14 = tpu.matmul %12, %13, %cst_6 {dimension_numbers = #tpu.dot_dimension_numbers<[1], [0], [0], [1], [0, 0, 1, 1], [], []>} : vector<128x128xf32>, vector<128x128xf32>, vector<128x128xf32> -> vector<128x128xf32>
    %15 = arith.addf %10, %14 : vector<128x128xf32>
    %16 = vector.extract_strided_slice %5 {offsets = [0, 2, 0], sizes = [8, 16, 128], strides = [1, 1, 1]} : vector<8x18x128xf32> to vector<8x16x128xf32>
    %17 = vector.shape_cast %16 : vector<8x16x128xf32> to vector<128x128xf32>
    %c256 = arith.constant 256 : index
    %c0_7 = arith.constant 0 : index
    %18 = vector.load %arg3[%c256, %c0_7] : memref<1152x128xf32, #tpu.memory_space<vmem>>, vector<128x128xf32>
    %cst_8 = arith.constant dense<0.000000e+00> : vector<128x128xf32>
    %19 = tpu.matmul %17, %18, %cst_8 {dimension_numbers = #tpu.dot_dimension_numbers<[1], [0], [0], [1], [0, 0, 1, 1], [], []>} : vector<128x128xf32>, vector<128x128xf32>, vector<128x128xf32> -> vector<128x128xf32>
    %20 = arith.addf %15, %19 : vector<128x128xf32>
    %c1_i32 = arith.constant 1 : i32
    %21 = arith.addi %0, %c1_i32 : i32
    %c0_9 = arith.constant 0 : index
    %22 = arith.index_cast %21 : i32 to index
    %c0_10 = arith.constant 0 : index
    %c0_11 = arith.constant 0 : index
    %23 = vector.load %arg2[%c0_9, %22, %c0_10, %c0_11] : memref<1x18x18x128xf32, #tpu.memory_space<vmem>>, vector<1x8x18x128xf32>
    %24 = vector.shape_cast %23 : vector<1x8x18x128xf32> to vector<8x18x128xf32>
    %25 = vector.extract_strided_slice %24 {offsets = [0, 0, 0], sizes = [8, 16, 128], strides = [1, 1, 1]} : vector<8x18x128xf32> to vector<8x16x128xf32>
    %26 = vector.shape_cast %25 : vector<8x16x128xf32> to vector<128x128xf32>
    %c384 = arith.constant 384 : index
    %c0_12 = arith.constant 0 : index
    %27 = vector.load %arg3[%c384, %c0_12] : memref<1152x128xf32, #tpu.memory_space<vmem>>, vector<128x128xf32>
    %cst_13 = arith.constant dense<0.000000e+00> : vector<128x128xf32>
    %28 = tpu.matmul %26, %27, %cst_13 {dimension_numbers = #tpu.dot_dimension_numbers<[1], [0], [0], [1], [0, 0, 1, 1], [], []>} : vector<128x128xf32>, vector<128x128xf32>, vector<128x128xf32> -> vector<128x128xf32>
    %29 = arith.addf %20, %28 : vector<128x128xf32>
    %30 = vector.extract_strided_slice %24 {offsets = [0, 1, 0], sizes = [8, 16, 128], strides = [1, 1, 1]} : vector<8x18x128xf32> to vector<8x16x128xf32>
    %31 = vector.shape_cast %30 : vector<8x16x128xf32> to vector<128x128xf32>
    %c512 = arith.constant 512 : index
    %c0_14 = arith.constant 0 : index
    %32 = vector.load %arg3[%c512, %c0_14] : memref<1152x128xf32, #tpu.memory_space<vmem>>, vector<128x128xf32>
    %cst_15 = arith.constant dense<0.000000e+00> : vector<128x128xf32>
    %33 = tpu.matmul %31, %32, %cst_15 {dimension_numbers = #tpu.dot_dimension_numbers<[1], [0], [0], [1], [0, 0, 1, 1], [], []>} : vector<128x128xf32>, vector<128x128xf32>, vector<128x128xf32> -> vector<128x128xf32>
    %34 = arith.addf %29, %33 : vector<128x128xf32>
    %35 = vector.extract_strided_slice %24 {offsets = [0, 2, 0], sizes = [8, 16, 128], strides = [1, 1, 1]} : vector<8x18x128xf32> to vector<8x16x128xf32>
    %36 = vector.shape_cast %35 : vector<8x16x128xf32> to vector<128x128xf32>
    %c640 = arith.constant 640 : index
    %c0_16 = arith.constant 0 : index
    %37 = vector.load %arg3[%c640, %c0_16] : memref<1152x128xf32, #tpu.memory_space<vmem>>, vector<128x128xf32>
    %cst_17 = arith.constant dense<0.000000e+00> : vector<128x128xf32>
    %38 = tpu.matmul %36, %37, %cst_17 {dimension_numbers = #tpu.dot_dimension_numbers<[1], [0], [0], [1], [0, 0, 1, 1], [], []>} : vector<128x128xf32>, vector<128x128xf32>, vector<128x128xf32> -> vector<128x128xf32>
    %39 = arith.addf %34, %38 : vector<128x128xf32>
    %c2_i32 = arith.constant 2 : i32
    %40 = arith.addi %0, %c2_i32 : i32
    %c0_18 = arith.constant 0 : index
    %41 = arith.index_cast %40 : i32 to index
    %c0_19 = arith.constant 0 : index
    %c0_20 = arith.constant 0 : index
    %42 = vector.load %arg2[%c0_18, %41, %c0_19, %c0_20] : memref<1x18x18x128xf32, #tpu.memory_space<vmem>>, vector<1x8x18x128xf32>
    %43 = vector.shape_cast %42 : vector<1x8x18x128xf32> to vector<8x18x128xf32>
    %44 = vector.extract_strided_slice %43 {offsets = [0, 0, 0], sizes = [8, 16, 128], strides = [1, 1, 1]} : vector<8x18x128xf32> to vector<8x16x128xf32>
    %45 = vector.shape_cast %44 : vector<8x16x128xf32> to vector<128x128xf32>
    %c768 = arith.constant 768 : index
    %c0_21 = arith.constant 0 : index
    %46 = vector.load %arg3[%c768, %c0_21] : memref<1152x128xf32, #tpu.memory_space<vmem>>, vector<128x128xf32>
    %cst_22 = arith.constant dense<0.000000e+00> : vector<128x128xf32>
    %47 = tpu.matmul %45, %46, %cst_22 {dimension_numbers = #tpu.dot_dimension_numbers<[1], [0], [0], [1], [0, 0, 1, 1], [], []>} : vector<128x128xf32>, vector<128x128xf32>, vector<128x128xf32> -> vector<128x128xf32>
    %48 = arith.addf %39, %47 : vector<128x128xf32>
    %49 = vector.extract_strided_slice %43 {offsets = [0, 1, 0], sizes = [8, 16, 128], strides = [1, 1, 1]} : vector<8x18x128xf32> to vector<8x16x128xf32>
    %50 = vector.shape_cast %49 : vector<8x16x128xf32> to vector<128x128xf32>
    %c896 = arith.constant 896 : index
    %c0_23 = arith.constant 0 : index
    %51 = vector.load %arg3[%c896, %c0_23] : memref<1152x128xf32, #tpu.memory_space<vmem>>, vector<128x128xf32>
    %cst_24 = arith.constant dense<0.000000e+00> : vector<128x128xf32>
    %52 = tpu.matmul %50, %51, %cst_24 {dimension_numbers = #tpu.dot_dimension_numbers<[1], [0], [0], [1], [0, 0, 1, 1], [], []>} : vector<128x128xf32>, vector<128x128xf32>, vector<128x128xf32> -> vector<128x128xf32>
    %53 = arith.addf %48, %52 : vector<128x128xf32>
    %54 = vector.extract_strided_slice %43 {offsets = [0, 2, 0], sizes = [8, 16, 128], strides = [1, 1, 1]} : vector<8x18x128xf32> to vector<8x16x128xf32>
    %55 = vector.shape_cast %54 : vector<8x16x128xf32> to vector<128x128xf32>
    %c1024 = arith.constant 1024 : index
    %c0_25 = arith.constant 0 : index
    %56 = vector.load %arg3[%c1024, %c0_25] : memref<1152x128xf32, #tpu.memory_space<vmem>>, vector<128x128xf32>
    %cst_26 = arith.constant dense<0.000000e+00> : vector<128x128xf32>
    %57 = tpu.matmul %55, %56, %cst_26 {dimension_numbers = #tpu.dot_dimension_numbers<[1], [0], [0], [1], [0, 0, 1, 1], [], []>} : vector<128x128xf32>, vector<128x128xf32>, vector<128x128xf32> -> vector<128x128xf32>
    %58 = arith.addf %53, %57 : vector<128x128xf32>
    %c0_27 = arith.constant 0 : index
    %c0_28 = arith.constant 0 : index
    %59 = vector.load %arg4[%c0_27, %c0_28] : memref<1x128xf32, #tpu.memory_space<vmem>>, vector<1x128xf32>
    %60 = vector.broadcast %59 : vector<1x128xf32> to vector<128x128xf32>
    %61 = arith.addf %58, %60 : vector<128x128xf32>
    %cst_29 = arith.constant 0.000000e+00 : f32
    %62 = vector.broadcast %cst_29 : f32 to vector<128x128xf32>
    %63 = arith.maximumf %61, %62 : vector<128x128xf32>
    %c0_30 = arith.constant 0 : index
    %c0_31 = arith.constant 0 : index
    %64 = vector.load %arg5[%c0_30, %c0_31] : memref<128x128xf32, #tpu.memory_space<vmem>>, vector<128x128xf32>
    tpu.vector_store %arg5[%c0_30, %c0_31], %63 {strides = array<i32>} : memref<128x128xf32, #tpu.memory_space<vmem>>, vector<128x128xf32>,
    %c0_i32_32 = arith.constant 0 : i32
    %65 = arith.cmpi eq, %arg1, %c0_i32_32 : i32
    %66 = arith.extui %65 : i1 to i32
    %c0_i32_33 = arith.constant 0 : i32
    %67 = arith.cmpi ne, %66, %c0_i32_33 : i32
    scf.if %67 {
      %cst_48 = arith.constant 0.000000e+00 : f32
      %89 = vector.broadcast %cst_48 : f32 to vector<8x128xf32>
      %c0_49 = arith.constant 0 : index
      %c0_50 = arith.constant 0 : index
      %c0_51 = arith.constant 0 : index
      %90 = vector.load %arg6[%c0_49, %c0_50, %c0_51] : memref<1x8x128xf32, #tpu.memory_space<vmem>>, vector<1x8x128xf32>
      %91 = vector.shape_cast %90 : vector<1x8x128xf32> to vector<8x128xf32>
      %92 = vector.shape_cast %89 : vector<8x128xf32> to vector<1x8x128xf32>
      tpu.vector_store %arg6[%c0_49, %c0_50, %c0_51], %92 {strides = array<i32>} : memref<1x8x128xf32, #tpu.memory_space<vmem>>, vector<1x8x128xf32>,
      %cst_52 = arith.constant 0.000000e+00 : f32
      %93 = vector.broadcast %cst_52 : f32 to vector<8x128xf32>
      %c0_53 = arith.constant 0 : index
      %c0_54 = arith.constant 0 : index
      %c0_55 = arith.constant 0 : index
      %94 = vector.load %arg7[%c0_53, %c0_54, %c0_55] : memref<1x8x128xf32, #tpu.memory_space<vmem>>, vector<1x8x128xf32>
      %95 = vector.shape_cast %94 : vector<1x8x128xf32> to vector<8x128xf32>
      %96 = vector.shape_cast %93 : vector<8x128xf32> to vector<1x8x128xf32>
      tpu.vector_store %arg7[%c0_53, %c0_54, %c0_55], %96 {strides = array<i32>} : memref<1x8x128xf32, #tpu.memory_space<vmem>>, vector<1x8x128xf32>,
    } else {
    }
    %cst_34 = arith.constant dense<0.000000e+00> : vector<128xf32>
    %68 = vector.multi_reduction <add>, %63, %cst_34 [0] : vector<128x128xf32> to vector<128xf32>
    %69 = vector.shape_cast %68 : vector<128xf32> to vector<1x128xf32>
    %70 = arith.mulf %63, %63 : vector<128x128xf32>
    %cst_35 = arith.constant dense<0.000000e+00> : vector<128xf32>
    %71 = vector.multi_reduction <add>, %70, %cst_35 [0] : vector<128x128xf32> to vector<128xf32>
    %72 = vector.shape_cast %71 : vector<128xf32> to vector<1x128xf32>
    %c0_36 = arith.constant 0 : index
    %c0_37 = arith.constant 0 : index
    %c0_38 = arith.constant 0 : index
    %73 = vector.load %arg6[%c0_36, %c0_37, %c0_38] : memref<1x8x128xf32, #tpu.memory_space<vmem>>, vector<1x8x128xf32>
    %74 = vector.shape_cast %73 : vector<1x8x128xf32> to vector<8x128xf32>
    %75 = vector.shape_cast %69 : vector<1x128xf32> to vector<1x128xf32>
    %76 = vector.broadcast %75 : vector<1x128xf32> to vector<8x128xf32>
    %77 = arith.addf %74, %76 : vector<8x128xf32>
    %c0_39 = arith.constant 0 : index
    %c0_40 = arith.constant 0 : index
    %c0_41 = arith.constant 0 : index
    %78 = vector.load %arg6[%c0_39, %c0_40, %c0_41] : memref<1x8x128xf32, #tpu.memory_space<vmem>>, vector<1x8x128xf32>
    %79 = vector.shape_cast %78 : vector<1x8x128xf32> to vector<8x128xf32>
    %80 = vector.shape_cast %77 : vector<8x128xf32> to vector<1x8x128xf32>
    tpu.vector_store %arg6[%c0_39, %c0_40, %c0_41], %80 {strides = array<i32>} : memref<1x8x128xf32, #tpu.memory_space<vmem>>, vector<1x8x128xf32>,
    %c0_42 = arith.constant 0 : index
    %c0_43 = arith.constant 0 : index
    %c0_44 = arith.constant 0 : index
    %81 = vector.load %arg7[%c0_42, %c0_43, %c0_44] : memref<1x8x128xf32, #tpu.memory_space<vmem>>, vector<1x8x128xf32>
    %82 = vector.shape_cast %81 : vector<1x8x128xf32> to vector<8x128xf32>
    %83 = vector.shape_cast %72 : vector<1x128xf32> to vector<1x128xf32>
    %84 = vector.broadcast %83 : vector<1x128xf32> to vector<8x128xf32>
    %85 = arith.addf %82, %84 : vector<8x128xf32>
    %c0_45 = arith.constant 0 : index
    %c0_46 = arith.constant 0 : index
    %c0_47 = arith.constant 0 : index
    %86 = vector.load %arg7[%c0_45, %c0_46, %c0_47] : memref<1x8x128xf32, #tpu.memory_space<vmem>>, vector<1x8x128xf32>
    %87 = vector.shape_cast %86 : vector<1x8x128xf32> to vector<8x128xf32>
    %88 = vector.shape_cast %85 : vector<8x128xf32> to vector<1x8x128xf32>
    tpu.vector_store %arg7[%c0_45, %c0_46, %c0_47], %88 {strides = array<i32>} : memref<1x8x128xf32, #tpu.memory_space<vmem>>, vector<1x8x128xf32>,
    return
  }
  func.func @transform_0(%arg0: i32, %arg1: i32) -> (i32, i32, i32, i32) {
    %c0_i32 = arith.constant 0 : i32
    %c0_i32_0 = arith.constant 0 : i32
    %c0_i32_1 = arith.constant 0 : i32
    %c0_i32_2 = arith.constant 0 : i32
    return %arg0, %c0_i32, %c0_i32_0, %c0_i32_1 : i32, i32, i32, i32
  }
  func.func @transform_1(%arg0: i32, %arg1: i32) -> (i32, i32) {
    %c0_i32 = arith.constant 0 : i32
    %c0_i32_0 = arith.constant 0 : i32
    %c0_i32_1 = arith.constant 0 : i32
    return %c0_i32, %c0_i32_0 : i32, i32
  }
  func.func @transform_2(%arg0: i32, %arg1: i32) -> (i32, i32) {
    %c0_i32 = arith.constant 0 : i32
    %c0_i32_0 = arith.constant 0 : i32
    %c0_i32_1 = arith.constant 0 : i32
    return %c0_i32, %c0_i32_0 : i32, i32
  }
  func.func @transform_3(%arg0: i32, %arg1: i32) -> (i32, i32) {
    %c2_i32 = arith.constant 2 : i32
    %0 = arith.muli %arg0, %c2_i32 : i32
    %1 = arith.addi %0, %arg1 : i32
    %c0_i32 = arith.constant 0 : i32
    %c0_i32_0 = arith.constant 0 : i32
    return %1, %c0_i32 : i32, i32
  }
  func.func @transform_4(%arg0: i32, %arg1: i32) -> (i32, i32, i32) {
    %c0_i32 = arith.constant 0 : i32
    %c0_i32_0 = arith.constant 0 : i32
    %c0_i32_1 = arith.constant 0 : i32
    return %arg0, %c0_i32, %c0_i32_0 : i32, i32, i32
  }
  func.func @transform_5(%arg0: i32, %arg1: i32) -> (i32, i32, i32) {
    %c0_i32 = arith.constant 0 : i32
    %c0_i32_0 = arith.constant 0 : i32
    %c0_i32_1 = arith.constant 0 : i32
    return %arg0, %c0_i32, %c0_i32_0 : i32, i32, i32
  }
}

</mosaic_0001>

<llo_original>
// kernel: tpu_custom_call.1
$region0: #{tpu_custom_call.1}
  #allocation0 [shape = 'u32[]', space=smem, size = 0x4, offset = 0x4, fixed_abs, tag = 'smem constant byte address 0x4 - core index']
  #allocation1 [shape = 'u32[144,128]{1,0:T(1,128)}', space=vmem, size = 0x12000, scoped, tag = 'internal scratch']
  %s0 = inlined_call_operand.vmem [shape: f32[2,18,18,128], index: 0, kind: input, shape index: {}]
  %s1 = inlined_call_operand.vmem [shape: f32[1152,128], index: 1, kind: input, shape index: {}]
  %s2 = inlined_call_operand.vmem [shape: f32[1,128], index: 2, kind: input, shape index: {}]
  %s3 = inlined_call_operand.hbm [shape: f32[512,128], index: 3, kind: output, shape index: {0}]
  %s4 = inlined_call_operand.hbm [shape: f32[2,8,128], index: 4, kind: output, shape index: {1}]
  %s5 = inlined_call_operand.hbm [shape: f32[2,8,128], index: 5, kind: output, shape index: {2}]
  %6 = xla_tuple %s3, %s4, %s5
  %s7 = sld [smem:[#allocation0]]
  $region65: #{tpu_custom_call.1} parent=0
    _
  %s9 = ssub.s32 1, %s7
  %s10 = scalar_select 0, %s9, %s7
  $region1: #{tpu_custom_call.1} parent=0
    #allocation2 [shape = 'u8[131072]{0}', space=vmem, size = 0x20000, scoped, tag = 'output window, operand 0']
    #allocation3 [shape = 's32[2]{0}', space=sflag, size = 0x8, scoped, tag = 'scoped memory for tpu_custom_call.1']
    #allocation4 [shape = 'u8[8192]{0}', space=vmem, size = 0x2000, scoped, tag = 'output window, operand 1']
    #allocation5 [shape = 's32[2]{0}', space=sflag, size = 0x8, scoped, tag = 'scoped memory for tpu_custom_call.1']
    #allocation6 [shape = 'u8[8192]{0}', space=vmem, size = 0x2000, scoped, tag = 'output window, operand 2']
    %11 = vsyncpa [#allocation3], 0
    %s12 = scalar_lea.sflag [#allocation3], 1
    %13 = vsyncpa %s12, 0
    %14 = vsyncpa [#allocation5], 0
    %s15 = scalar_lea.sflag [#allocation5], 1
    %16 = vsyncpa %s15, 0
    loop: start=0, step=1, limit=6
    $region2: #{tpu_custom_call.1} parent=1 // loop_pre_header
      _
    $region3: #{tpu_custom_call.1} parent=1 // loop_header
      %s18 = sphi 0, %s22
      %p19 = scmp.ge.s32.totalorder %s18, 6
      %s25 = sphi 0, %s37
      %s26 = sphi 0, %s33
      %s27 = sphi 0, %s25
      %s28 = sphi 0, %s26
      %s29 = sphi 0, %s27
      %s30 = sphi 0, %s28
      %s40 = sphi 0, %s42
      %s43 = sphi 0, %s40
      %s44 = sphi 0, %s43
      %s60 = sphi 0, %s44
      %s64 = sphi 0, %s64
      %s66 = sphi 0, %s64
      %s67 = sphi 0, %s66
      %s81 = sphi 0, %s67
      %s85 = sphi 0, %s85
      %s87 = sphi 0, %s85
      %s88 = sphi 0, %s87
      %s102 = sphi 0, %s88
      %s112 = sphi 0, %s114
      %s115 = sphi 0, %s112
      %s116 = sphi 0, %s115
      %s132 = sphi 0, %s116
      %s138 = sphi 0, %s140
      %s141 = sphi 0, %s138
      %s142 = sphi 0, %s141
      %s158 = sphi 0, %s142
      %s164 = sphi 0, %s166
      %s167 = sphi 0, %s164
      %s168 = sphi 0, %s167
      %s184 = sphi 0, %s168
    $region4: #{tpu_custom_call.1} parent=1 // loop_header_branch
      %21 = sbr.rel (%p19) target = $region8
    $region5: #{tpu_custom_call.1} parent=1 // loop_body
      %s23 = ssub.s32 %s18, 1
      %s24 = ssub.s32 %s18, 2
      %s31 = sadd.s32 1, %s26
      %p32 = scmp.ge.s32.totalorder %s31, 2
      %s33 = scalar_select %p32, 0, %s31
      %s34 = sadd.s32 1, %s25
      %s35 = scalar_select %p32, %s34, %s25
      %p36 = scmp.ge.s32.totalorder %s35, 2
      %s37 = scalar_select %p36, 0, %s35
      %s38 = ssub.s32 %s25, %s37
      %p39 = scmp.eq.s32.totalorder %s38, 0
      %s41 = sadd.s32 %s40, 1
      %s42 = scalar_select %p39, %s40, %s41
      %p45 = pneg %p39
      %p46 = scmp.eq.s32.totalorder %s18, 3
      %p47 = por %p45, %p46
      %p48 = scmp.ne.s32.totalorder %s40, %s43
      %p49 = scmp.eq.s32.totalorder %s18, 0
      %p50 = por %p48, %p49
      %p51 = scmp.ne.s32.totalorder %s40, %s43
      %p52 = scmp.eq.s32.totalorder %s23, 3
      %p53 = por %p51, %p52
      %p54 = scmp.ne.s32.totalorder %s43, %s44
      %p55 = scmp.eq.s32.totalorder %s23, 0
      %p56 = por %p54, %p55
      %p57 = scmp.ne.s32.totalorder %s43, %s44
      %p58 = scmp.eq.s32.totalorder %s24, 3
      %p59 = por %p57, %p58
      %p61 = scmp.ne.s32.totalorder %s44, %s60
      %p62 = scmp.eq.s32.totalorder %s24, 0
      %p63 = por %p61, %p62
      %s65 = sadd.s32 %s64, 1
      %p68 = scmp.eq.s32.totalorder %s18, 3
      %p69 = scmp.ne.s32.totalorder %s64, %s66
      %p70 = scmp.eq.s32.totalorder %s18, 0
      %p71 = por %p69, %p70
      %p72 = scmp.ne.s32.totalorder %s64, %s66
      %p73 = scmp.eq.s32.totalorder %s23, 3
      %p74 = por %p72, %p73
      %p75 = scmp.ne.s32.totalorder %s66, %s67
      %p76 = scmp.eq.s32.totalorder %s23, 0
      %p77 = por %p75, %p76
      %p78 = scmp.ne.s32.totalorder %s66, %s67
      %p79 = scmp.eq.s32.totalorder %s24, 3
      %p80 = por %p78, %p79
      %p82 = scmp.ne.s32.totalorder %s67, %s81
      %p83 = scmp.eq.s32.totalorder %s24, 0
      %p84 = por %p82, %p83
      %s86 = sadd.s32 %s85, 1
      %p89 = scmp.eq.s32.totalorder %s18, 3
      %p90 = scmp.ne.s32.totalorder %s85, %s87
      %p91 = scmp.eq.s32.totalorder %s18, 0
      %p92 = por %p90, %p91
      %p93 = scmp.ne.s32.totalorder %s85, %s87
      %p94 = scmp.eq.s32.totalorder %s23, 3
      %p95 = por %p93, %p94
      %p96 = scmp.ne.s32.totalorder %s87, %s88
      %p97 = scmp.eq.s32.totalorder %s23, 0
      %p98 = por %p96, %p97
      %p99 = scmp.ne.s32.totalorder %s87, %s88
      %p100 = scmp.eq.s32.totalorder %s24, 3
      %p101 = por %p99, %p100
      %p103 = scmp.ne.s32.totalorder %s88, %s102
      %p104 = scmp.eq.s32.totalorder %s24, 0
      %p105 = por %p103, %p104
      %s106 = smul.u32 %s25, 2
      %s107 = sadd.s32 %s106, %s26
      %s108 = smul.u32 %s37, 2
      %s109 = sadd.s32 %s108, %s33
      %s110 = ssub.s32 %s107, %s109
      %p111 = scmp.eq.s32.totalorder %s110, 0
      %s113 = sadd.s32 %s112, 1
      %s114 = scalar_select %p111, %s112, %s113
      %p117 = pneg %p111
      %p118 = scmp.eq.s32.totalorder %s18, 3
      %p119 = por %p117, %p118
      %p120 = scmp.ne.s32.totalorder %s112, %s115
      %p121 = scmp.eq.s32.totalorder %s18, 0
      %p122 = por %p120, %p121
      %p123 = scmp.ne.s32.totalorder %s112, %s115
      %p124 = scmp.eq.s32.totalorder %s23, 3
      %p125 = por %p123, %p124
      %p126 = scmp.ne.s32.totalorder %s115, %s116
      %p127 = scmp.eq.s32.totalorder %s23, 0
      %p128 = por %p126, %p127
      %p129 = scmp.ne.s32.totalorder %s115, %s116
      %p130 = scmp.eq.s32.totalorder %s24, 3
      %p131 = por %p129, %p130
      %p133 = scmp.ne.s32.totalorder %s116, %s132
      %p134 = scmp.eq.s32.totalorder %s24, 0
      %p135 = por %p133, %p134
      %s136 = ssub.s32 %s25, %s37
      %p137 = scmp.eq.s32.totalorder %s136, 0
      %s139 = sadd.s32 %s138, 1
      %s140 = scalar_select %p137, %s138, %s139
      %p143 = pneg %p137
      %p144 = scmp.eq.s32.totalorder %s18, 3
      %p145 = por %p143, %p144
      %p146 = scmp.ne.s32.totalorder %s138, %s141
      %p147 = scmp.eq.s32.totalorder %s18, 0
      %p148 = por %p146, %p147
      %p149 = scmp.ne.s32.totalorder %s138, %s141
      %p150 = scmp.eq.s32.totalorder %s23, 3
      %p151 = por %p149, %p150
      %p152 = scmp.ne.s32.totalorder %s141, %s142
      %p153 = scmp.eq.s32.totalorder %s23, 0
      %p154 = por %p152, %p153
      %p155 = scmp.ne.s32.totalorder %s141, %s142
      %p156 = scmp.eq.s32.totalorder %s24, 3
      %p157 = por %p155, %p156
      %p159 = scmp.ne.s32.totalorder %s142, %s158
      %p160 = scmp.eq.s32.totalorder %s24, 0
      %p161 = por %p159, %p160
      %s162 = ssub.s32 %s25, %s37
      %p163 = scmp.eq.s32.totalorder %s162, 0
      %s165 = sadd.s32 %s164, 1
      %s166 = scalar_select %p163, %s164, %s165
      %p169 = pneg %p163
      %p170 = scmp.eq.s32.totalorder %s18, 3
      %p171 = por %p169, %p170
      %p172 = scmp.ne.s32.totalorder %s164, %s167
      %p173 = scmp.eq.s32.totalorder %s18, 0
      %p174 = por %p172, %p173
      %p175 = scmp.ne.s32.totalorder %s164, %s167
      %p176 = scmp.eq.s32.totalorder %s23, 3
      %p177 = por %p175, %p176
      %p178 = scmp.ne.s32.totalorder %s167, %s168
      %p179 = scmp.eq.s32.totalorder %s23, 0
      %p180 = por %p178, %p179
      %p181 = scmp.ne.s32.totalorder %s167, %s168
      %p182 = scmp.eq.s32.totalorder %s24, 3
      %p183 = por %p181, %p182
      %p185 = scmp.ne.s32.totalorder %s168, %s184
      %p186 = scmp.eq.s32.totalorder %s24, 0
      %p187 = por %p185, %p186
      %p188 = scmp.le.s32.totalorder 1, %s18
      %p189 = scmp.lt.s32.totalorder %s18, 5
      %p190 = pnand %p188, %p189
      %p191 = pneg %p190
      // Predicated region
      $region9: #{tpu_custom_call.1} parent=5 // pred_check
        _
      $region10: #{tpu_custom_call.1} parent=5 // pred_check_branch
        %193 = sbr.rel (%p190) target = $region12
      $region11: #{tpu_custom_call.1} parent=5 // pred_region
        %s194 = ssub.s32 %s18, 1
        // Predicated region
        $region13: #{tpu_custom_call.1} parent=11 // pred_check
          %p195 = pneg %p77
        $region14: #{tpu_custom_call.1} parent=11 // pred_check_branch
          %197 = sbr.rel (%p195) target = $region16
        $region15: #{tpu_custom_call.1} parent=11 // pred_region
          _
        $region16: #{tpu_custom_call.1} parent=11 // pred_fallthru
          _
        // Predicated region
        $region17: #{tpu_custom_call.1} parent=11 // pred_check
          %p198 = pneg %p98
        $region18: #{tpu_custom_call.1} parent=11 // pred_check_branch
          %200 = sbr.rel (%p198) target = $region20
        $region19: #{tpu_custom_call.1} parent=11 // pred_region
          _
        $region20: #{tpu_custom_call.1} parent=11 // pred_fallthru
          _
      $region12: #{tpu_custom_call.1} parent=5 // pred_fallthru
        _
      %p201 = scmp.lt.s32.totalorder %s18, 4
      // Predicated region
      $region21: #{tpu_custom_call.1} parent=5 // pred_check
        %p202 = pneg %p201
      $region22: #{tpu_custom_call.1} parent=5 // pred_check_branch
        %204 = sbr.rel (%p202) target = $region24
      $region23: #{tpu_custom_call.1} parent=5 // pred_region
        // Predicated region
        $region25: #{tpu_custom_call.1} parent=23 // pred_check
          %p205 = pneg %p50
        $region26: #{tpu_custom_call.1} parent=23 // pred_check_branch
          %207 = sbr.rel (%p205) target = $region28
        $region27: #{tpu_custom_call.1} parent=23 // pred_region
          %p208 = scmp.lt.s32.totalorder %s25, 1
          %s209 = scalar_select %p208, %s25, 1
          %s210 = smul.addr %s209, 54
          %s211 = smul.addr %s210, 8
          %s212 = scalar_lea.vmem %s0, %s211
        $region28: #{tpu_custom_call.1} parent=23 // pred_fallthru
          _
      $region24: #{tpu_custom_call.1} parent=5 // pred_fallthru
        _
      %p213 = scmp.le.s32.totalorder 1, %s18
      %p214 = scmp.lt.s32.totalorder %s18, 5
      %p215 = pnand %p213, %p214
      %p216 = pneg %p215
      // Predicated region
      $region29: #{tpu_custom_call.1} parent=5 // pred_check
        _
      $region30: #{tpu_custom_call.1} parent=5 // pred_check_branch
        %218 = sbr.rel (%p215) target = $region32
      $region31: #{tpu_custom_call.1} parent=5 // pred_region
        %s219 = ssub.s32 %s18, 1
        %p220 = scmp.lt.s32.totalorder %s27, 1
        %s221 = scalar_select %p220, %s27, 1
        %s222 = smul.addr %s221, 54
        %s223 = smul.addr %s222, 8
        %s224 = scalar_lea.vmem %s0, %s223
        %p225 = pneg %p56
        %p226 = pneg %p53
        %p227 = pneg %p77
        %p228 = pneg %p74
        %p229 = pneg %p98
        %p230 = pneg %p95
        %p231 = pneg %p128
        %p232 = pneg %p125
        %s233 = sand.u32 %s115, 1
        %s234 = scalar_lea.sflag [#allocation3], %s233
        %s235 = sand.u32 %s115, 1
        %s236 = smul.addr %s235, 128
        %s237 = scalar_lea.vmem [#allocation2], %s236
        %p238 = pneg %p154
        %p239 = pneg %p151
        %s240 = sand.u32 %s23, 1
        %s241 = scalar_lea.sflag [#allocation5], %s240
        %s242 = sand.u32 %s141, 1
        %s243 = smul.addr %s242, 8
        %s244 = scalar_lea.vmem [#allocation4], %s243
        %p245 = pneg %p180
        %p246 = pneg %p177
        %s247 = sand.u32 %s23, 1
        %s248 = scalar_lea.sflag [#allocation5], %s247
        %s249 = sand.u32 %s167, 1
        %s250 = smul.addr %s249, 8
        %s251 = scalar_lea.vmem [#allocation6], %s250
        %p252 = scmp.lt.s32.totalorder %s27, 1
        %s253 = scalar_select %p252, %s27, 1
        %s254 = smul.addr %s253, 54
        %s255 = smul.addr %s254, 8
        %s256 = scalar_lea.vmem %s0, %s255
        %s257 = smul.u32 %s27, 2
        %s258 = sadd.s32 %s257, %s28
        %s259 = smul.u32 16, %s258
        %s260 = smul.u32 %s28, 8
        %s261 = smul.u32 %s260, 24
        %s262 = scalar_lea.vmem %s256, %s261
        %v263 = vld [vmem:[%s262] sm:$0xff]
        %v264 = vld [vmem:[%s262 + $0x8] sm:$0xff]
        %v265 = vld [vmem:[%s262 + $0x10] sm:$0x3]
        %v266 = vld [vmem:[%s262 + $0x18] sm:$0xff]
        %v267 = vld [vmem:[%s262 + $0x20] sm:$0xff]
        %v268 = vld [vmem:[%s262 + $0x28] sm:$0x3]
        %v269 = vld [vmem:[%s262 + $0x30] sm:$0xff]
        %v270 = vld [vmem:[%s262 + $0x38] sm:$0xff]
        %v271 = vld [vmem:[%s262 + $0x40] sm:$0x3]
        %v272 = vld [vmem:[%s262 + $0x48] sm:$0xff]
        %v273 = vld [vmem:[%s262 + $0x50] sm:$0xff]
        %v274 = vld [vmem:[%s262 + $0x58] sm:$0x3]
        %v275 = vld [vmem:[%s262 + $0x60] sm:$0xff]
        %v276 = vld [vmem:[%s262 + $0x68] sm:$0xff]
        %v277 = vld [vmem:[%s262 + $0x70] sm:$0x3]
        %v278 = vld [vmem:[%s262 + $0x78] sm:$0xff]
        %v279 = vld [vmem:[%s262 + $0x80] sm:$0xff]
        %v280 = vld [vmem:[%s262 + $0x88] sm:$0x3]
        %v281 = vld [vmem:[%s262 + $0x90] sm:$0xff]
        %v282 = vld [vmem:[%s262 + $0x98] sm:$0xff]
        %v283 = vld [vmem:[%s262 + $0xa0] sm:$0x3]
        %v284 = vld [vmem:[%s262 + $0xa8] sm:$0xff]
        %v285 = vld [vmem:[%s262 + $0xb0] sm:$0xff]
        %v286 = vld [vmem:[%s262 + $0xb8] sm:$0x3]
        %v287 = vld [vmem:[%s1] sm:$0xff]
        %v288 = vld [vmem:[%s1 + $0x8] sm:$0xff]
        %v289 = vld [vmem:[%s1 + $0x10] sm:$0xff]
        %v290 = vld [vmem:[%s1 + $0x18] sm:$0xff]
        %v291 = vld [vmem:[%s1 + $0x20] sm:$0xff]
        %v292 = vld [vmem:[%s1 + $0x28] sm:$0xff]
        %v293 = vld [vmem:[%s1 + $0x30] sm:$0xff]
        %v294 = vld [vmem:[%s1 + $0x38] sm:$0xff]
        %v295 = vld [vmem:[%s1 + $0x40] sm:$0xff]
        %v296 = vld [vmem:[%s1 + $0x48] sm:$0xff]
        %v297 = vld [vmem:[%s1 + $0x50] sm:$0xff]
        %v298 = vld [vmem:[%s1 + $0x58] sm:$0xff]
        %v299 = vld [vmem:[%s1 + $0x60] sm:$0xff]
        %v300 = vld [vmem:[%s1 + $0x68] sm:$0xff]
        %v301 = vld [vmem:[%s1 + $0x70] sm:$0xff]
        %v302 = vld [vmem:[%s1 + $0x78] sm:$0xff]
        %vm327 = vcmask 1046528
        %v328 = vrot.slane %v263, 1
        %v329 = vrot.slane %v264, 1
        %v330 = vsel %vm327, %v328, %v329
        %v331 = vrot.slane %v265, 1
        %v332 = vsel %vm327, %v329, %v331
        %v333 = vrot.slane %v266, 1
        %v334 = vrot.slane %v267, 1
        %v335 = vsel %vm327, %v333, %v334
        %v336 = vrot.slane %v268, 1
        %v337 = vsel %vm327, %v334, %v336
        %v338 = vrot.slane %v269, 1
        %v339 = vrot.slane %v270, 1
        %v340 = vsel %vm327, %v338, %v339
        %v341 = vrot.slane %v271, 1
        %v342 = vsel %vm327, %v339, %v341
        %v343 = vrot.slane %v272, 1
        %v344 = vrot.slane %v273, 1
        %v345 = vsel %vm327, %v343, %v344
        %v346 = vrot.slane %v274, 1
        %v347 = vsel %vm327, %v344, %v346
        %v348 = vrot.slane %v275, 1
        %v349 = vrot.slane %v276, 1
        %v350 = vsel %vm327, %v348, %v349
        %v351 = vrot.slane %v277, 1
        %v352 = vsel %vm327, %v349, %v351
        %v353 = vrot.slane %v278, 1
        %v354 = vrot.slane %v279, 1
        %v355 = vsel %vm327, %v353, %v354
        %v356 = vrot.slane %v280, 1
        %v357 = vsel %vm327, %v354, %v356
        %v358 = vrot.slane %v281, 1
        %v359 = vrot.slane %v282, 1
        %v360 = vsel %vm327, %v358, %v359
        %v361 = vrot.slane %v283, 1
        %v362 = vsel %vm327, %v359, %v361
        %v363 = vrot.slane %v284, 1
        %v364 = vrot.slane %v285, 1
        %v365 = vsel %vm327, %v363, %v364
        %v366 = vrot.slane %v286, 1
        %v367 = vsel %vm327, %v364, %v366
        %v384 = vld [vmem:[%s1 + $0x80] sm:$0xff]
        %v385 = vld [vmem:[%s1 + $0x88] sm:$0xff]
        %v386 = vld [vmem:[%s1 + $0x90] sm:$0xff]
        %v387 = vld [vmem:[%s1 + $0x98] sm:$0xff]
        %v388 = vld [vmem:[%s1 + $0xa0] sm:$0xff]
        %v389 = vld [vmem:[%s1 + $0xa8] sm:$0xff]
        %v390 = vld [vmem:[%s1 + $0xb0] sm:$0xff]
        %v391 = vld [vmem:[%s1 + $0xb8] sm:$0xff]
        %v392 = vld [vmem:[%s1 + $0xc0] sm:$0xff]
        %v393 = vld [vmem:[%s1 + $0xc8] sm:$0xff]
        %v394 = vld [vmem:[%s1 + $0xd0] sm:$0xff]
        %v395 = vld [vmem:[%s1 + $0xd8] sm:$0xff]
        %v396 = vld [vmem:[%s1 + $0xe0] sm:$0xff]
        %v397 = vld [vmem:[%s1 + $0xe8] sm:$0xff]
        %v398 = vld [vmem:[%s1 + $0xf0] sm:$0xff]
        %v399 = vld [vmem:[%s1 + $0xf8] sm:$0xff]
        %400 = vmatprep.subr.mxu0 0.0
        %401 = vmatpush1.msra.mxu0 %v399
        %402 = vmatprep.subr.mxu0 0.0
        %403 = vmatpush1.msra.mxu0 %v398
        %404 = vmatprep.subr.mxu0 0.0
        %405 = vmatpush1.msra.mxu0 %v397
        %406 = vmatprep.subr.mxu0 0.0
        %407 = vmatpush1.msra.mxu0 %v396
        %408 = vmatprep.subr.mxu0 0.0
        %409 = vmatpush1.msra.mxu0 %v395
        %410 = vmatprep.subr.mxu0 0.0
        %411 = vmatpush1.msra.mxu0 %v394
        %412 = vmatprep.subr.mxu0 0.0
        %413 = vmatpush1.msra.mxu0 %v393
        %414 = vmatprep.subr.mxu0 0.0
        %415 = vmatpush1.msra.mxu0 %v392
        %416 = vmatprep.subr.mxu0 0.0
        %417 = vmatpush1.msra.mxu0 %v391
        %418 = vmatprep.subr.mxu0 0.0
        %419 = vmatpush1.msra.mxu0 %v390
        %420 = vmatprep.subr.mxu0 0.0
        %421 = vmatpush1.msra.mxu0 %v389
        %422 = vmatprep.subr.mxu0 0.0
        %423 = vmatpush1.msra.mxu0 %v388
        %424 = vmatprep.subr.mxu0 0.0
        %425 = vmatpush1.msra.mxu0 %v387
        %426 = vmatprep.subr.mxu0 0.0
        %427 = vmatpush1.msra.mxu0 %v386
        %428 = vmatprep.subr.mxu0 0.0
        %429 = vmatpush1.msra.mxu0 %v385
        %430 = vmatprep.subr.mxu0 0.0
        %431 = vmatpush1.msra.mxu0 %v384
        %432 = vmatprep.subr.mxu0 0.0
        %433 = vmatpush2.msra.mxu0 0.0
        %434 = vmatprep.subr.mxu0 0.0
        %435 = vmatpush2.msra.mxu0 0.0
        %436 = vmatprep.subr.mxu0 0.0
        %437 = vmatpush2.msra.mxu0 0.0
        %438 = vmatprep.subr.mxu0 0.0
        %439 = vmatpush2.msra.mxu0 0.0
        %440 = vmatprep.subr.mxu0 0.0
        %441 = vmatpush2.msra.mxu0 0.0
        %442 = vmatprep.subr.mxu0 0.0
        %443 = vmatpush2.msra.mxu0 0.0
        %444 = vmatprep.subr.mxu0 0.0
        %445 = vmatpush2.msra.mxu0 0.0
        %446 = vmatprep.subr.mxu0 0.0
        %447 = vmatpush2.msra.mxu0 0.0
        %448 = vmatprep.subr.mxu0 0.0
        %449 = vmatpush2.msra.mxu0 0.0
        %450 = vmatprep.subr.mxu0 0.0
        %451 = vmatpush2.msra.mxu0 0.0
        %452 = vmatprep.subr.mxu0 0.0
        %453 = vmatpush2.msra.mxu0 0.0
        %454 = vmatprep.subr.mxu0 0.0
        %455 = vmatpush2.msra.mxu0 0.0
        %456 = vmatprep.subr.mxu0 0.0
        %457 = vmatpush2.msra.mxu0 0.0
        %458 = vmatprep.subr.mxu0 0.0
        %459 = vmatpush2.msra.mxu0 0.0
        %460 = vmatprep.subr.mxu0 0.0
        %461 = vmatpush2.msra.mxu0 0.0
        %462 = vmatprep.subr.mxu0 0.0
        %463 = vmatpush2.msra.mxu0 0.0
        %464 = vmatprep.mubr.f32.mxu0 0.0
        %465 = vmatmul.mubr.f32.gmra.mxu0 %v330
        %v466 = vpop.f32.mrf.mxu0
        %v467 = vadd.f32 0.0, %v466
        %v468 = vpop.f32.mrf.mxu0
        %469 = vmatprep.mubr.f32.mxu0 0.0
        %470 = vmatmul.mubr.f32.gmra.mxu0 %v332
        %v471 = vpop.f32.mrf.mxu0
        %v472 = vadd.f32 0.0, %v471
        %v473 = vpop.f32.mrf.mxu0
        %474 = vmatprep.mubr.f32.mxu0 0.0
        %475 = vmatmul.mubr.f32.gmra.mxu0 %v335
        %v476 = vpop.f32.mrf.mxu0
        %v477 = vadd.f32 0.0, %v476
        %v478 = vpop.f32.mrf.mxu0
        %479 = vmatprep.mubr.f32.mxu0 0.0
        %480 = vmatmul.mubr.f32.gmra.mxu0 %v337
        %v481 = vpop.f32.mrf.mxu0
        %v482 = vadd.f32 0.0, %v481
        %v483 = vpop.f32.mrf.mxu0
        %484 = vmatprep.mubr.f32.mxu0 0.0
        %485 = vmatmul.mubr.f32.gmra.mxu0 %v340
        %v486 = vpop.f32.mrf.mxu0
        %v487 = vadd.f32 0.0, %v486
        %v488 = vpop.f32.mrf.mxu0
        %489 = vmatprep.mubr.f32.mxu0 0.0
        %490 = vmatmul.mubr.f32.gmra.mxu0 %v342
        %v491 = vpop.f32.mrf.mxu0
        %v492 = vadd.f32 0.0, %v491
        %v493 = vpop.f32.mrf.mxu0
        %494 = vmatprep.mubr.f32.mxu0 0.0
        %495 = vmatmul.mubr.f32.gmra.mxu0 %v345
        %v496 = vpop.f32.mrf.mxu0
        %v497 = vadd.f32 0.0, %v496
        %v498 = vpop.f32.mrf.mxu0
        %499 = vmatprep.mubr.f32.mxu0 0.0
        %500 = vmatmul.mubr.f32.gmra.mxu0 %v347
        %v501 = vpop.f32.mrf.mxu0
        %v502 = vadd.f32 0.0, %v501
        %v503 = vpop.f32.mrf.mxu0
        %504 = vmatprep.mubr.f32.mxu0 0.0
        %505 = vmatmul.mubr.f32.gmra.mxu0 %v350
        %v506 = vpop.f32.mrf.mxu0
        %v507 = vadd.f32 0.0, %v506
        %v508 = vpop.f32.mrf.mxu0
        %509 = vmatprep.mubr.f32.mxu0 0.0
        %510 = vmatmul.mubr.f32.gmra.mxu0 %v352
        %v511 = vpop.f32.mrf.mxu0
        %v512 = vadd.f32 0.0, %v511
        %v513 = vpop.f32.mrf.mxu0
        %514 = vmatprep.mubr.f32.mxu0 0.0
        %515 = vmatmul.mubr.f32.gmra.mxu0 %v355
        %v516 = vpop.f32.mrf.mxu0
        %v517 = vadd.f32 0.0, %v516
        %v518 = vpop.f32.mrf.mxu0
        %519 = vmatprep.mubr.f32.mxu0 0.0
        %520 = vmatmul.mubr.f32.gmra.mxu0 %v357
        %v521 = vpop.f32.mrf.mxu0
        %v522 = vadd.f32 0.0, %v521
        %v523 = vpop.f32.mrf.mxu0
        %524 = vmatprep.mubr.f32.mxu0 0.0
        %525 = vmatmul.mubr.f32.gmra.mxu0 %v360
        %v526 = vpop.f32.mrf.mxu0
        %v527 = vadd.f32 0.0, %v526
        %v528 = vpop.f32.mrf.mxu0
        %529 = vmatprep.mubr.f32.mxu0 0.0
        %530 = vmatmul.mubr.f32.gmra.mxu0 %v362
        %v531 = vpop.f32.mrf.mxu0
        %v532 = vadd.f32 0.0, %v531
        %v533 = vpop.f32.mrf.mxu0
        %534 = vmatprep.mubr.f32.mxu0 0.0
        %535 = vmatmul.mubr.f32.gmra.mxu0 %v365
        %v536 = vpop.f32.mrf.mxu0
        %v537 = vadd.f32 0.0, %v536
        %v538 = vpop.f32.mrf.mxu0
        %539 = vmatprep.mubr.f32.mxu0 0.0
        %540 = vmatmul.mubr.f32.gmra.mxu0 %v367
        %v541 = vpop.f32.mrf.mxu0
        %v542 = vadd.f32 0.0, %v541
        %v543 = vpop.f32.mrf.mxu0
        %544 = vdwg.mxu0
        %545 = vmatprep.subr.mxu0 0.0
        %546 = vmatpush1.msra.mxu0 %v302
        %547 = vmatprep.subr.mxu0 0.0
        %548 = vmatpush1.msra.mxu0 %v301
        %549 = vmatprep.subr.mxu0 0.0
        %550 = vmatpush1.msra.mxu0 %v300
        %551 = vmatprep.subr.mxu0 0.0
        %552 = vmatpush1.msra.mxu0 %v299
        %553 = vmatprep.subr.mxu0 0.0
        %554 = vmatpush1.msra.mxu0 %v298
        %555 = vmatprep.subr.mxu0 0.0
        %556 = vmatpush1.msra.mxu0 %v297
        %557 = vmatprep.subr.mxu0 0.0
        %558 = vmatpush1.msra.mxu0 %v296
        %559 = vmatprep.subr.mxu0 0.0
        %560 = vmatpush1.msra.mxu0 %v295
        %561 = vmatprep.subr.mxu0 0.0
        %562 = vmatpush1.msra.mxu0 %v294
        %563 = vmatprep.subr.mxu0 0.0
        %564 = vmatpush1.msra.mxu0 %v293
        %565 = vmatprep.subr.mxu0 0.0
        %566 = vmatpush1.msra.mxu0 %v292
        %567 = vmatprep.subr.mxu0 0.0
        %568 = vmatpush1.msra.mxu0 %v291
        %569 = vmatprep.subr.mxu0 0.0
        %570 = vmatpush1.msra.mxu0 %v290
        %571 = vmatprep.subr.mxu0 0.0
        %572 = vmatpush1.msra.mxu0 %v289
        %573 = vmatprep.subr.mxu0 0.0
        %574 = vmatpush1.msra.mxu0 %v288
        %575 = vmatprep.subr.mxu0 0.0
        %576 = vmatpush1.msra.mxu0 %v287
        %577 = vmatprep.subr.mxu0 0.0
        %578 = vmatpush2.msra.mxu0 0.0
        %579 = vmatprep.subr.mxu0 0.0
        %580 = vmatpush2.msra.mxu0 0.0
        %581 = vmatprep.subr.mxu0 0.0
        %582 = vmatpush2.msra.mxu0 0.0
        %583 = vmatprep.subr.mxu0 0.0
        %584 = vmatpush2.msra.mxu0 0.0
        %585 = vmatprep.subr.mxu0 0.0
        %586 = vmatpush2.msra.mxu0 0.0
        %587 = vmatprep.subr.mxu0 0.0
        %588 = vmatpush2.msra.mxu0 0.0
        %589 = vmatprep.subr.mxu0 0.0
        %590 = vmatpush2.msra.mxu0 0.0
        %591 = vmatprep.subr.mxu0 0.0
        %592 = vmatpush2.msra.mxu0 0.0
        %593 = vmatprep.subr.mxu0 0.0
        %594 = vmatpush2.msra.mxu0 0.0
        %595 = vmatprep.subr.mxu0 0.0
        %596 = vmatpush2.msra.mxu0 0.0
        %597 = vmatprep.subr.mxu0 0.0
        %598 = vmatpush2.msra.mxu0 0.0
        %599 = vmatprep.subr.mxu0 0.0
        %600 = vmatpush2.msra.mxu0 0.0
        %601 = vmatprep.subr.mxu0 0.0
        %602 = vmatpush2.msra.mxu0 0.0
        %603 = vmatprep.subr.mxu0 0.0
        %604 = vmatpush2.msra.mxu0 0.0
        %605 = vmatprep.subr.mxu0 0.0
        %606 = vmatpush2.msra.mxu0 0.0
        %607 = vmatprep.subr.mxu0 0.0
        %608 = vmatpush2.msra.mxu0 0.0
        %609 = vmatprep.mubr.f32.mxu0 0.0
        %610 = vmatmul.mubr.f32.gmra.mxu0 %v263
        %v611 = vpop.f32.mrf.mxu0
        %v612 = vadd.f32 %v467, %v611
        %v613 = vpop.f32.mrf.mxu0
        %614 = vmatprep.mubr.f32.mxu0 0.0
        %615 = vmatmul.mubr.f32.gmra.mxu0 %v264
        %v616 = vpop.f32.mrf.mxu0
        %v617 = vadd.f32 %v472, %v616
        %v618 = vpop.f32.mrf.mxu0
        %619 = vmatprep.mubr.f32.mxu0 0.0
        %620 = vmatmul.mubr.f32.gmra.mxu0 %v266
        %v621 = vpop.f32.mrf.mxu0
        %v622 = vadd.f32 %v477, %v621
        %v623 = vpop.f32.mrf.mxu0
        %624 = vmatprep.mubr.f32.mxu0 0.0
        %625 = vmatmul.mubr.f32.gmra.mxu0 %v267
        %v626 = vpop.f32.mrf.mxu0
        %v627 = vadd.f32 %v482, %v626
        %v628 = vpop.f32.mrf.mxu0
        %629 = vmatprep.mubr.f32.mxu0 0.0
        %630 = vmatmul.mubr.f32.gmra.mxu0 %v269
        %v631 = vpop.f32.mrf.mxu0
        %v632 = vadd.f32 %v487, %v631
        %v633 = vpop.f32.mrf.mxu0
        %634 = vmatprep.mubr.f32.mxu0 0.0
        %635 = vmatmul.mubr.f32.gmra.mxu0 %v270
        %v636 = vpop.f32.mrf.mxu0
        %v637 = vadd.f32 %v492, %v636
        %v638 = vpop.f32.mrf.mxu0
        %639 = vmatprep.mubr.f32.mxu0 0.0
        %640 = vmatmul.mubr.f32.gmra.mxu0 %v272
        %v641 = vpop.f32.mrf.mxu0
        %v642 = vadd.f32 %v497, %v641
        %v643 = vpop.f32.mrf.mxu0
        %644 = vmatprep.mubr.f32.mxu0 0.0
        %645 = vmatmul.mubr.f32.gmra.mxu0 %v273
        %v646 = vpop.f32.mrf.mxu0
        %v647 = vadd.f32 %v502, %v646
        %v648 = vpop.f32.mrf.mxu0
        %649 = vmatprep.mubr.f32.mxu0 0.0
        %650 = vmatmul.mubr.f32.gmra.mxu0 %v275
        %v651 = vpop.f32.mrf.mxu0
        %v652 = vadd.f32 %v507, %v651
        %v653 = vpop.f32.mrf.mxu0
        %654 = vmatprep.mubr.f32.mxu0 0.0
        %655 = vmatmul.mubr.f32.gmra.mxu0 %v276
        %v656 = vpop.f32.mrf.mxu0
        %v657 = vadd.f32 %v512, %v656
        %v658 = vpop.f32.mrf.mxu0
        %659 = vmatprep.mubr.f32.mxu0 0.0
        %660 = vmatmul.mubr.f32.gmra.mxu0 %v278
        %v661 = vpop.f32.mrf.mxu0
        %v662 = vadd.f32 %v517, %v661
        %v663 = vpop.f32.mrf.mxu0
        %664 = vmatprep.mubr.f32.mxu0 0.0
        %665 = vmatmul.mubr.f32.gmra.mxu0 %v279
        %v666 = vpop.f32.mrf.mxu0
        %v667 = vadd.f32 %v522, %v666
        %v668 = vpop.f32.mrf.mxu0
        %669 = vmatprep.mubr.f32.mxu0 0.0
        %670 = vmatmul.mubr.f32.gmra.mxu0 %v281
        %v671 = vpop.f32.mrf.mxu0
        %v672 = vadd.f32 %v527, %v671
        %v673 = vpop.f32.mrf.mxu0
        %674 = vmatprep.mubr.f32.mxu0 0.0
        %675 = vmatmul.mubr.f32.gmra.mxu0 %v282
        %v676 = vpop.f32.mrf.mxu0
        %v677 = vadd.f32 %v532, %v676
        %v678 = vpop.f32.mrf.mxu0
        %679 = vmatprep.mubr.f32.mxu0 0.0
        %680 = vmatmul.mubr.f32.gmra.mxu0 %v284
        %v681 = vpop.f32.mrf.mxu0
        %v682 = vadd.f32 %v537, %v681
        %v683 = vpop.f32.mrf.mxu0
        %684 = vmatprep.mubr.f32.mxu0 0.0
        %685 = vmatmul.mubr.f32.gmra.mxu0 %v285
        %v686 = vpop.f32.mrf.mxu0
        %v687 = vadd.f32 %v542, %v686
        %v688 = vpop.f32.mrf.mxu0
        %689 = vdwg.mxu0
        %vm690 = vcmask 1045504
        %v691 = vrot.slane %v263, 2
        %v692 = vrot.slane %v264, 2
        %v693 = vsel %vm690, %v691, %v692
        %v694 = vrot.slane %v265, 2
        %v695 = vsel %vm690, %v692, %v694
        %v696 = vrot.slane %v266, 2
        %v697 = vrot.slane %v267, 2
        %v698 = vsel %vm690, %v696, %v697
        %v699 = vrot.slane %v268, 2
        %v700 = vsel %vm690, %v697, %v699
        %v701 = vrot.slane %v269, 2
        %v702 = vrot.slane %v270, 2
        %v703 = vsel %vm690, %v701, %v702
        %v704 = vrot.slane %v271, 2
        %v705 = vsel %vm690, %v702, %v704
        %v706 = vrot.slane %v272, 2
        %v707 = vrot.slane %v273, 2
        %v708 = vsel %vm690, %v706, %v707
        %v709 = vrot.slane %v274, 2
        %v710 = vsel %vm690, %v707, %v709
        %v711 = vrot.slane %v275, 2
        %v712 = vrot.slane %v276, 2
        %v713 = vsel %vm690, %v711, %v712
        %v714 = vrot.slane %v277, 2
        %v715 = vsel %vm690, %v712, %v714
        %v716 = vrot.slane %v278, 2
        %v717 = vrot.slane %v279, 2
        %v718 = vsel %vm690, %v716, %v717
        %v719 = vrot.slane %v280, 2
        %v720 = vsel %vm690, %v717, %v719
        %v721 = vrot.slane %v281, 2
        %v722 = vrot.slane %v282, 2
        %v723 = vsel %vm690, %v721, %v722
        %v724 = vrot.slane %v283, 2
        %v725 = vsel %vm690, %v722, %v724
        %v726 = vrot.slane %v284, 2
        %v727 = vrot.slane %v285, 2
        %v728 = vsel %vm690, %v726, %v727
        %v729 = vrot.slane %v286, 2
        %v730 = vsel %vm690, %v727, %v729
        %v747 = vld [vmem:[%s1 + $0x100] sm:$0xff]
        %v748 = vld [vmem:[%s1 + $0x108] sm:$0xff]
        %v749 = vld [vmem:[%s1 + $0x110] sm:$0xff]
        %v750 = vld [vmem:[%s1 + $0x118] sm:$0xff]
        %v751 = vld [vmem:[%s1 + $0x120] sm:$0xff]
        %v752 = vld [vmem:[%s1 + $0x128] sm:$0xff]
        %v753 = vld [vmem:[%s1 + $0x130] sm:$0xff]
        %v754 = vld [vmem:[%s1 + $0x138] sm:$0xff]
        %v755 = vld [vmem:[%s1 + $0x140] sm:$0xff]
        %v756 = vld [vmem:[%s1 + $0x148] sm:$0xff]
        %v757 = vld [vmem:[%s1 + $0x150] sm:$0xff]
        %v758 = vld [vmem:[%s1 + $0x158] sm:$0xff]
        %v759 = vld [vmem:[%s1 + $0x160] sm:$0xff]
        %v760 = vld [vmem:[%s1 + $0x168] sm:$0xff]
        %v761 = vld [vmem:[%s1 + $0x170] sm:$0xff]
        %v762 = vld [vmem:[%s1 + $0x178] sm:$0xff]
        %763 = vmatprep.subr.mxu0 0.0
        %764 = vmatpush1.msra.mxu0 %v762
        %765 = vmatprep.subr.mxu0 0.0
        %766 = vmatpush1.msra.mxu0 %v761
        %767 = vmatprep.subr.mxu0 0.0
        %768 = vmatpush1.msra.mxu0 %v760
        %769 = vmatprep.subr.mxu0 0.0
        %770 = vmatpush1.msra.mxu0 %v759
        %771 = vmatprep.subr.mxu0 0.0
        %772 = vmatpush1.msra.mxu0 %v758
        %773 = vmatprep.subr.mxu0 0.0
        %774 = vmatpush1.msra.mxu0 %v757
        %775 = vmatprep.subr.mxu0 0.0
        %776 = vmatpush1.msra.mxu0 %v756
        %777 = vmatprep.subr.mxu0 0.0
        %778 = vmatpush1.msra.mxu0 %v755
        %779 = vmatprep.subr.mxu0 0.0
        %780 = vmatpush1.msra.mxu0 %v754
        %781 = vmatprep.subr.mxu0 0.0
        %782 = vmatpush1.msra.mxu0 %v753
        %783 = vmatprep.subr.mxu0 0.0
        %784 = vmatpush1.msra.mxu0 %v752
        %785 = vmatprep.subr.mxu0 0.0
        %786 = vmatpush1.msra.mxu0 %v751
        %787 = vmatprep.subr.mxu0 0.0
        %788 = vmatpush1.msra.mxu0 %v750
        %789 = vmatprep.subr.mxu0 0.0
        %790 = vmatpush1.msra.mxu0 %v749
        %791 = vmatprep.subr.mxu0 0.0
        %792 = vmatpush1.msra.mxu0 %v748
        %793 = vmatprep.subr.mxu0 0.0
        %794 = vmatpush1.msra.mxu0 %v747
        %795 = vmatprep.subr.mxu0 0.0
        %796 = vmatpush2.msra.mxu0 0.0
        %797 = vmatprep.subr.mxu0 0.0
        %798 = vmatpush2.msra.mxu0 0.0
        %799 = vmatprep.subr.mxu0 0.0
        %800 = vmatpush2.msra.mxu0 0.0
        %801 = vmatprep.subr.mxu0 0.0
        %802 = vmatpush2.msra.mxu0 0.0
        %803 = vmatprep.subr.mxu0 0.0
        %804 = vmatpush2.msra.mxu0 0.0
        %805 = vmatprep.subr.mxu0 0.0
        %806 = vmatpush2.msra.mxu0 0.0
        %807 = vmatprep.subr.mxu0 0.0
        %808 = vmatpush2.msra.mxu0 0.0
        %809 = vmatprep.subr.mxu0 0.0
        %810 = vmatpush2.msra.mxu0 0.0
        %811 = vmatprep.subr.mxu0 0.0
        %812 = vmatpush2.msra.mxu0 0.0
        %813 = vmatprep.subr.mxu0 0.0
        %814 = vmatpush2.msra.mxu0 0.0
        %815 = vmatprep.subr.mxu0 0.0
        %816 = vmatpush2.msra.mxu0 0.0
        %817 = vmatprep.subr.mxu0 0.0
        %818 = vmatpush2.msra.mxu0 0.0
        %819 = vmatprep.subr.mxu0 0.0
        %820 = vmatpush2.msra.mxu0 0.0
        %821 = vmatprep.subr.mxu0 0.0
        %822 = vmatpush2.msra.mxu0 0.0
        %823 = vmatprep.subr.mxu0 0.0
        %824 = vmatpush2.msra.mxu0 0.0
        %825 = vmatprep.subr.mxu0 0.0
        %826 = vmatpush2.msra.mxu0 0.0
        %827 = vmatprep.mubr.f32.mxu0 0.0
        %828 = vmatmul.mubr.f32.gmra.mxu0 %v693
        %v829 = vpop.f32.mrf.mxu0
        %v830 = vadd.f32 0.0, %v829
        %v831 = vpop.f32.mrf.mxu0
        %832 = vmatprep.mubr.f32.mxu0 0.0
        %833 = vmatmul.mubr.f32.gmra.mxu0 %v695
        %v834 = vpop.f32.mrf.mxu0
        %v835 = vadd.f32 0.0, %v834
        %v836 = vpop.f32.mrf.mxu0
        %837 = vmatprep.mubr.f32.mxu0 0.0
        %838 = vmatmul.mubr.f32.gmra.mxu0 %v698
        %v839 = vpop.f32.mrf.mxu0
        %v840 = vadd.f32 0.0, %v839
        %v841 = vpop.f32.mrf.mxu0
        %842 = vmatprep.mubr.f32.mxu0 0.0
        %843 = vmatmul.mubr.f32.gmra.mxu0 %v700
        %v844 = vpop.f32.mrf.mxu0
        %v845 = vadd.f32 0.0, %v844
        %v846 = vpop.f32.mrf.mxu0
        %847 = vmatprep.mubr.f32.mxu0 0.0
        %848 = vmatmul.mubr.f32.gmra.mxu0 %v703
        %v849 = vpop.f32.mrf.mxu0
        %v850 = vadd.f32 0.0, %v849
        %v851 = vpop.f32.mrf.mxu0
        %852 = vmatprep.mubr.f32.mxu0 0.0
        %853 = vmatmul.mubr.f32.gmra.mxu0 %v705
        %v854 = vpop.f32.mrf.mxu0
        %v855 = vadd.f32 0.0, %v854
        %v856 = vpop.f32.mrf.mxu0
        %857 = vmatprep.mubr.f32.mxu0 0.0
        %858 = vmatmul.mubr.f32.gmra.mxu0 %v708
        %v859 = vpop.f32.mrf.mxu0
        %v860 = vadd.f32 0.0, %v859
        %v861 = vpop.f32.mrf.mxu0
        %862 = vmatprep.mubr.f32.mxu0 0.0
        %863 = vmatmul.mubr.f32.gmra.mxu0 %v710
        %v864 = vpop.f32.mrf.mxu0
        %v865 = vadd.f32 0.0, %v864
        %v866 = vpop.f32.mrf.mxu0
        %867 = vmatprep.mubr.f32.mxu0 0.0
        %868 = vmatmul.mubr.f32.gmra.mxu0 %v713
        %v869 = vpop.f32.mrf.mxu0
        %v870 = vadd.f32 0.0, %v869
        %v871 = vpop.f32.mrf.mxu0
        %872 = vmatprep.mubr.f32.mxu0 0.0
        %873 = vmatmul.mubr.f32.gmra.mxu0 %v715
        %v874 = vpop.f32.mrf.mxu0
        %v875 = vadd.f32 0.0, %v874
        %v876 = vpop.f32.mrf.mxu0
        %877 = vmatprep.mubr.f32.mxu0 0.0
        %878 = vmatmul.mubr.f32.gmra.mxu0 %v718
        %v879 = vpop.f32.mrf.mxu0
        %v880 = vadd.f32 0.0, %v879
        %v881 = vpop.f32.mrf.mxu0
        %882 = vmatprep.mubr.f32.mxu0 0.0
        %883 = vmatmul.mubr.f32.gmra.mxu0 %v720
        %v884 = vpop.f32.mrf.mxu0
        %v885 = vadd.f32 0.0, %v884
        %v886 = vpop.f32.mrf.mxu0
        %887 = vmatprep.mubr.f32.mxu0 0.0
        %888 = vmatmul.mubr.f32.gmra.mxu0 %v723
        %v889 = vpop.f32.mrf.mxu0
        %v890 = vadd.f32 0.0, %v889
        %v891 = vpop.f32.mrf.mxu0
        %892 = vmatprep.mubr.f32.mxu0 0.0
        %893 = vmatmul.mubr.f32.gmra.mxu0 %v725
        %v894 = vpop.f32.mrf.mxu0
        %v895 = vadd.f32 0.0, %v894
        %v896 = vpop.f32.mrf.mxu0
        %897 = vmatprep.mubr.f32.mxu0 0.0
        %898 = vmatmul.mubr.f32.gmra.mxu0 %v728
        %v899 = vpop.f32.mrf.mxu0
        %v900 = vadd.f32 0.0, %v899
        %v901 = vpop.f32.mrf.mxu0
        %902 = vmatprep.mubr.f32.mxu0 0.0
        %903 = vmatmul.mubr.f32.gmra.mxu0 %v730
        %v904 = vpop.f32.mrf.mxu0
        %v905 = vadd.f32 0.0, %v904
        %v906 = vpop.f32.mrf.mxu0
        %907 = vdwg.mxu0
        %v908 = vadd.f32 %v612, %v830
        %v909 = vadd.f32 %v617, %v835
        %v910 = vadd.f32 %v622, %v840
        %v911 = vadd.f32 %v627, %v845
        %v912 = vadd.f32 %v632, %v850
        %v913 = vadd.f32 %v637, %v855
        %v914 = vadd.f32 %v642, %v860
        %v915 = vadd.f32 %v647, %v865
        %v916 = vadd.f32 %v652, %v870
        %v917 = vadd.f32 %v657, %v875
        %v918 = vadd.f32 %v662, %v880
        %v919 = vadd.f32 %v667, %v885
        %v920 = vadd.f32 %v672, %v890
        %v921 = vadd.f32 %v677, %v895
        %v922 = vadd.f32 %v682, %v900
        %v923 = vadd.f32 %v687, %v905
        %s924 = sadd.s32 %s260, 1
        %s925 = smul.u32 %s924, 24
        %s926 = scalar_lea.vmem %s256, %s925
        %v927 = vld [vmem:[%s926] sm:$0xff]
        %v928 = vld [vmem:[%s926 + $0x8] sm:$0xff]
        %v929 = vld [vmem:[%s926 + $0x10] sm:$0x3]
        %v930 = vld [vmem:[%s926 + $0x18] sm:$0xff]
        %v931 = vld [vmem:[%s926 + $0x20] sm:$0xff]
        %v932 = vld [vmem:[%s926 + $0x28] sm:$0x3]
        %v933 = vld [vmem:[%s926 + $0x30] sm:$0xff]
        %v934 = vld [vmem:[%s926 + $0x38] sm:$0xff]
        %v935 = vld [vmem:[%s926 + $0x40] sm:$0x3]
        %v936 = vld [vmem:[%s926 + $0x48] sm:$0xff]
        %v937 = vld [vmem:[%s926 + $0x50] sm:$0xff]
        %v938 = vld [vmem:[%s926 + $0x58] sm:$0x3]
        %v939 = vld [vmem:[%s926 + $0x60] sm:$0xff]
        %v940 = vld [vmem:[%s926 + $0x68] sm:$0xff]
        %v941 = vld [vmem:[%s926 + $0x70] sm:$0x3]
        %v942 = vld [vmem:[%s926 + $0x78] sm:$0xff]
        %v943 = vld [vmem:[%s926 + $0x80] sm:$0xff]
        %v944 = vld [vmem:[%s926 + $0x88] sm:$0x3]
        %v945 = vld [vmem:[%s926 + $0x90] sm:$0xff]
        %v946 = vld [vmem:[%s926 + $0x98] sm:$0xff]
        %v947 = vld [vmem:[%s926 + $0xa0] sm:$0x3]
        %v948 = vld [vmem:[%s926 + $0xa8] sm:$0xff]
        %v949 = vld [vmem:[%s926 + $0xb0] sm:$0xff]
        %v950 = vld [vmem:[%s926 + $0xb8] sm:$0x3]
        %v951 = vld [vmem:[%s1 + $0x180] sm:$0xff]
        %v952 = vld [vmem:[%s1 + $0x188] sm:$0xff]
        %v953 = vld [vmem:[%s1 + $0x190] sm:$0xff]
        %v954 = vld [vmem:[%s1 + $0x198] sm:$0xff]
        %v955 = vld [vmem:[%s1 + $0x1a0] sm:$0xff]
        %v956 = vld [vmem:[%s1 + $0x1a8] sm:$0xff]
        %v957 = vld [vmem:[%s1 + $0x1b0] sm:$0xff]
        %v958 = vld [vmem:[%s1 + $0x1b8] sm:$0xff]
        %v959 = vld [vmem:[%s1 + $0x1c0] sm:$0xff]
        %v960 = vld [vmem:[%s1 + $0x1c8] sm:$0xff]
        %v961 = vld [vmem:[%s1 + $0x1d0] sm:$0xff]
        %v962 = vld [vmem:[%s1 + $0x1d8] sm:$0xff]
        %v963 = vld [vmem:[%s1 + $0x1e0] sm:$0xff]
        %v964 = vld [vmem:[%s1 + $0x1e8] sm:$0xff]
        %v965 = vld [vmem:[%s1 + $0x1f0] sm:$0xff]
        %v966 = vld [vmem:[%s1 + $0x1f8] sm:$0xff]
        %967 = vmatprep.subr.mxu0 0.0
        %968 = vmatpush1.msra.mxu0 %v966
        %969 = vmatprep.subr.mxu0 0.0
        %970 = vmatpush1.msra.mxu0 %v965
        %971 = vmatprep.subr.mxu0 0.0
        %972 = vmatpush1.msra.mxu0 %v964
        %973 = vmatprep.subr.mxu0 0.0
        %974 = vmatpush1.msra.mxu0 %v963
        %975 = vmatprep.subr.mxu0 0.0
        %976 = vmatpush1.msra.mxu0 %v962
        %977 = vmatprep.subr.mxu0 0.0
        %978 = vmatpush1.msra.mxu0 %v961
        %979 = vmatprep.subr.mxu0 0.0
        %980 = vmatpush1.msra.mxu0 %v960
        %981 = vmatprep.subr.mxu0 0.0
        %982 = vmatpush1.msra.mxu0 %v959
        %983 = vmatprep.subr.mxu0 0.0
        %984 = vmatpush1.msra.mxu0 %v958
        %985 = vmatprep.subr.mxu0 0.0
        %986 = vmatpush1.msra.mxu0 %v957
        %987 = vmatprep.subr.mxu0 0.0
        %988 = vmatpush1.msra.mxu0 %v956
        %989 = vmatprep.subr.mxu0 0.0
        %990 = vmatpush1.msra.mxu0 %v955
        %991 = vmatprep.subr.mxu0 0.0
        %992 = vmatpush1.msra.mxu0 %v954
        %993 = vmatprep.subr.mxu0 0.0
        %994 = vmatpush1.msra.mxu0 %v953
        %995 = vmatprep.subr.mxu0 0.0
        %996 = vmatpush1.msra.mxu0 %v952
        %997 = vmatprep.subr.mxu0 0.0
        %998 = vmatpush1.msra.mxu0 %v951
        %999 = vmatprep.subr.mxu0 0.0
        %1000 = vmatpush2.msra.mxu0 0.0
        %1001 = vmatprep.subr.mxu0 0.0
        %1002 = vmatpush2.msra.mxu0 0.0
        %1003 = vmatprep.subr.mxu0 0.0
        %1004 = vmatpush2.msra.mxu0 0.0
        %1005 = vmatprep.subr.mxu0 0.0
        %1006 = vmatpush2.msra.mxu0 0.0
        %1007 = vmatprep.subr.mxu0 0.0
        %1008 = vmatpush2.msra.mxu0 0.0
        %1009 = vmatprep.subr.mxu0 0.0
        %1010 = vmatpush2.msra.mxu0 0.0
        %1011 = vmatprep.subr.mxu0 0.0
        %1012 = vmatpush2.msra.mxu0 0.0
        %1013 = vmatprep.subr.mxu0 0.0
        %1014 = vmatpush2.msra.mxu0 0.0
        %1015 = vmatprep.subr.mxu0 0.0
        %1016 = vmatpush2.msra.mxu0 0.0
        %1017 = vmatprep.subr.mxu0 0.0
        %1018 = vmatpush2.msra.mxu0 0.0
        %1019 = vmatprep.subr.mxu0 0.0
        %1020 = vmatpush2.msra.mxu0 0.0
        %1021 = vmatprep.subr.mxu0 0.0
        %1022 = vmatpush2.msra.mxu0 0.0
        %1023 = vmatprep.subr.mxu0 0.0
        %1024 = vmatpush2.msra.mxu0 0.0
        %1025 = vmatprep.subr.mxu0 0.0
        %1026 = vmatpush2.msra.mxu0 0.0
        %1027 = vmatprep.subr.mxu0 0.0
        %1028 = vmatpush2.msra.mxu0 0.0
        %1029 = vmatprep.subr.mxu0 0.0
        %1030 = vmatpush2.msra.mxu0 0.0
        %1031 = vmatprep.mubr.f32.mxu0 0.0
        %1032 = vmatmul.mubr.f32.gmra.mxu0 %v927
        %v1033 = vpop.f32.mrf.mxu0
        %v1034 = vadd.f32 0.0, %v1033
        %v1035 = vpop.f32.mrf.mxu0
        %1036 = vmatprep.mubr.f32.mxu0 0.0
        %1037 = vmatmul.mubr.f32.gmra.mxu0 %v928
        %v1038 = vpop.f32.mrf.mxu0
        %v1039 = vadd.f32 0.0, %v1038
        %v1040 = vpop.f32.mrf.mxu0
        %1041 = vmatprep.mubr.f32.mxu0 0.0
        %1042 = vmatmul.mubr.f32.gmra.mxu0 %v930
        %v1043 = vpop.f32.mrf.mxu0
        %v1044 = vadd.f32 0.0, %v1043
        %v1045 = vpop.f32.mrf.mxu0
        %1046 = vmatprep.mubr.f32.mxu0 0.0
        %1047 = vmatmul.mubr.f32.gmra.mxu0 %v931
        %v1048 = vpop.f32.mrf.mxu0
        %v1049 = vadd.f32 0.0, %v1048
        %v1050 = vpop.f32.mrf.mxu0
        %1051 = vmatprep.mubr.f32.mxu0 0.0
        %1052 = vmatmul.mubr.f32.gmra.mxu0 %v933
        %v1053 = vpop.f32.mrf.mxu0
        %v1054 = vadd.f32 0.0, %v1053
        %v1055 = vpop.f32.mrf.mxu0
        %1056 = vmatprep.mubr.f32.mxu0 0.0
        %1057 = vmatmul.mubr.f32.gmra.mxu0 %v934
        %v1058 = vpop.f32.mrf.mxu0
        %v1059 = vadd.f32 0.0, %v1058
        %v1060 = vpop.f32.mrf.mxu0
        %1061 = vmatprep.mubr.f32.mxu0 0.0
        %1062 = vmatmul.mubr.f32.gmra.mxu0 %v936
        %v1063 = vpop.f32.mrf.mxu0
        %v1064 = vadd.f32 0.0, %v1063
        %v1065 = vpop.f32.mrf.mxu0
        %1066 = vmatprep.mubr.f32.mxu0 0.0
        %1067 = vmatmul.mubr.f32.gmra.mxu0 %v937
        %v1068 = vpop.f32.mrf.mxu0
        %v1069 = vadd.f32 0.0, %v1068
        %v1070 = vpop.f32.mrf.mxu0
        %1071 = vmatprep.mubr.f32.mxu0 0.0
        %1072 = vmatmul.mubr.f32.gmra.mxu0 %v939
        %v1073 = vpop.f32.mrf.mxu0
        %v1074 = vadd.f32 0.0, %v1073
        %v1075 = vpop.f32.mrf.mxu0
        %1076 = vmatprep.mubr.f32.mxu0 0.0
        %1077 = vmatmul.mubr.f32.gmra.mxu0 %v940
        %v1078 = vpop.f32.mrf.mxu0
        %v1079 = vadd.f32 0.0, %v1078
        %v1080 = vpop.f32.mrf.mxu0
        %1081 = vmatprep.mubr.f32.mxu0 0.0
        %1082 = vmatmul.mubr.f32.gmra.mxu0 %v942
        %v1083 = vpop.f32.mrf.mxu0
        %v1084 = vadd.f32 0.0, %v1083
        %v1085 = vpop.f32.mrf.mxu0
        %1086 = vmatprep.mubr.f32.mxu0 0.0
        %1087 = vmatmul.mubr.f32.gmra.mxu0 %v943
        %v1088 = vpop.f32.mrf.mxu0
        %v1089 = vadd.f32 0.0, %v1088
        %v1090 = vpop.f32.mrf.mxu0
        %1091 = vmatprep.mubr.f32.mxu0 0.0
        %1092 = vmatmul.mubr.f32.gmra.mxu0 %v945
        %v1093 = vpop.f32.mrf.mxu0
        %v1094 = vadd.f32 0.0, %v1093
        %v1095 = vpop.f32.mrf.mxu0
        %1096 = vmatprep.mubr.f32.mxu0 0.0
        %1097 = vmatmul.mubr.f32.gmra.mxu0 %v946
        %v1098 = vpop.f32.mrf.mxu0
        %v1099 = vadd.f32 0.0, %v1098
        %v1100 = vpop.f32.mrf.mxu0
        %1101 = vmatprep.mubr.f32.mxu0 0.0
        %1102 = vmatmul.mubr.f32.gmra.mxu0 %v948
        %v1103 = vpop.f32.mrf.mxu0
        %v1104 = vadd.f32 0.0, %v1103
        %v1105 = vpop.f32.mrf.mxu0
        %1106 = vmatprep.mubr.f32.mxu0 0.0
        %1107 = vmatmul.mubr.f32.gmra.mxu0 %v949
        %v1108 = vpop.f32.mrf.mxu0
        %v1109 = vadd.f32 0.0, %v1108
        %v1110 = vpop.f32.mrf.mxu0
        %1111 = vdwg.mxu0
        %v1112 = vadd.f32 %v908, %v1034
        %v1113 = vadd.f32 %v909, %v1039
        %v1114 = vadd.f32 %v910, %v1044
        %v1115 = vadd.f32 %v911, %v1049
        %v1116 = vadd.f32 %v912, %v1054
        %v1117 = vadd.f32 %v913, %v1059
        %v1118 = vadd.f32 %v914, %v1064
        %v1119 = vadd.f32 %v915, %v1069
        %v1120 = vadd.f32 %v916, %v1074
        %v1121 = vadd.f32 %v917, %v1079
        %v1122 = vadd.f32 %v918, %v1084
        %v1123 = vadd.f32 %v919, %v1089
        %v1124 = vadd.f32 %v920, %v1094
        %v1125 = vadd.f32 %v921, %v1099
        %v1126 = vadd.f32 %v922, %v1104
        %v1127 = vadd.f32 %v923, %v1109
        %v1152 = vrot.slane %v927, 1
        %v1153 = vrot.slane %v928, 1
        %v1154 = vsel %vm327, %v1152, %v1153
        %v1155 = vrot.slane %v929, 1
        %v1156 = vsel %vm327, %v1153, %v1155
        %v1157 = vrot.slane %v930, 1
        %v1158 = vrot.slane %v931, 1
        %v1159 = vsel %vm327, %v1157, %v1158
        %v1160 = vrot.slane %v932, 1
        %v1161 = vsel %vm327, %v1158, %v1160
        %v1162 = vrot.slane %v933, 1
        %v1163 = vrot.slane %v934, 1
        %v1164 = vsel %vm327, %v1162, %v1163
        %v1165 = vrot.slane %v935, 1
        %v1166 = vsel %vm327, %v1163, %v1165
        %v1167 = vrot.slane %v936, 1
        %v1168 = vrot.slane %v937, 1
        %v1169 = vsel %vm327, %v1167, %v1168
        %v1170 = vrot.slane %v938, 1
        %v1171 = vsel %vm327, %v1168, %v1170
        %v1172 = vrot.slane %v939, 1
        %v1173 = vrot.slane %v940, 1
        %v1174 = vsel %vm327, %v1172, %v1173
        %v1175 = vrot.slane %v941, 1
        %v1176 = vsel %vm327, %v1173, %v1175
        %v1177 = vrot.slane %v942, 1
        %v1178 = vrot.slane %v943, 1
        %v1179 = vsel %vm327, %v1177, %v1178
        %v1180 = vrot.slane %v944, 1
        %v1181 = vsel %vm327, %v1178, %v1180
        %v1182 = vrot.slane %v945, 1
        %v1183 = vrot.slane %v946, 1
        %v1184 = vsel %vm327, %v1182, %v1183
        %v1185 = vrot.slane %v947, 1
        %v1186 = vsel %vm327, %v1183, %v1185
        %v1187 = vrot.slane %v948, 1
        %v1188 = vrot.slane %v949, 1
        %v1189 = vsel %vm327, %v1187, %v1188
        %v1190 = vrot.slane %v950, 1
        %v1191 = vsel %vm327, %v1188, %v1190
        %v1208 = vld [vmem:[%s1 + $0x200] sm:$0xff]
        %v1209 = vld [vmem:[%s1 + $0x208] sm:$0xff]
        %v1210 = vld [vmem:[%s1 + $0x210] sm:$0xff]
        %v1211 = vld [vmem:[%s1 + $0x218] sm:$0xff]
        %v1212 = vld [vmem:[%s1 + $0x220] sm:$0xff]
        %v1213 = vld [vmem:[%s1 + $0x228] sm:$0xff]
        %v1214 = vld [vmem:[%s1 + $0x230] sm:$0xff]
        %v1215 = vld [vmem:[%s1 + $0x238] sm:$0xff]
        %v1216 = vld [vmem:[%s1 + $0x240] sm:$0xff]
        %v1217 = vld [vmem:[%s1 + $0x248] sm:$0xff]
        %v1218 = vld [vmem:[%s1 + $0x250] sm:$0xff]
        %v1219 = vld [vmem:[%s1 + $0x258] sm:$0xff]
        %v1220 = vld [vmem:[%s1 + $0x260] sm:$0xff]
        %v1221 = vld [vmem:[%s1 + $0x268] sm:$0xff]
        %v1222 = vld [vmem:[%s1 + $0x270] sm:$0xff]
        %v1223 = vld [vmem:[%s1 + $0x278] sm:$0xff]
        %1224 = vmatprep.subr.mxu0 0.0
        %1225 = vmatpush1.msra.mxu0 %v1223
        %1226 = vmatprep.subr.mxu0 0.0
        %1227 = vmatpush1.msra.mxu0 %v1222
        %1228 = vmatprep.subr.mxu0 0.0
        %1229 = vmatpush1.msra.mxu0 %v1221
        %1230 = vmatprep.subr.mxu0 0.0
        %1231 = vmatpush1.msra.mxu0 %v1220
        %1232 = vmatprep.subr.mxu0 0.0
        %1233 = vmatpush1.msra.mxu0 %v1219
        %1234 = vmatprep.subr.mxu0 0.0
        %1235 = vmatpush1.msra.mxu0 %v1218
        %1236 = vmatprep.subr.mxu0 0.0
        %1237 = vmatpush1.msra.mxu0 %v1217
        %1238 = vmatprep.subr.mxu0 0.0
        %1239 = vmatpush1.msra.mxu0 %v1216
        %1240 = vmatprep.subr.mxu0 0.0
        %1241 = vmatpush1.msra.mxu0 %v1215
        %1242 = vmatprep.subr.mxu0 0.0
        %1243 = vmatpush1.msra.mxu0 %v1214
        %1244 = vmatprep.subr.mxu0 0.0
        %1245 = vmatpush1.msra.mxu0 %v1213
        %1246 = vmatprep.subr.mxu0 0.0
        %1247 = vmatpush1.msra.mxu0 %v1212
        %1248 = vmatprep.subr.mxu0 0.0
        %1249 = vmatpush1.msra.mxu0 %v1211
        %1250 = vmatprep.subr.mxu0 0.0
        %1251 = vmatpush1.msra.mxu0 %v1210
        %1252 = vmatprep.subr.mxu0 0.0
        %1253 = vmatpush1.msra.mxu0 %v1209
        %1254 = vmatprep.subr.mxu0 0.0
        %1255 = vmatpush1.msra.mxu0 %v1208
        %1256 = vmatprep.subr.mxu0 0.0
        %1257 = vmatpush2.msra.mxu0 0.0
        %1258 = vmatprep.subr.mxu0 0.0
        %1259 = vmatpush2.msra.mxu0 0.0
        %1260 = vmatprep.subr.mxu0 0.0
        %1261 = vmatpush2.msra.mxu0 0.0
        %1262 = vmatprep.subr.mxu0 0.0
        %1263 = vmatpush2.msra.mxu0 0.0
        %1264 = vmatprep.subr.mxu0 0.0
        %1265 = vmatpush2.msra.mxu0 0.0
        %1266 = vmatprep.subr.mxu0 0.0
        %1267 = vmatpush2.msra.mxu0 0.0
        %1268 = vmatprep.subr.mxu0 0.0
        %1269 = vmatpush2.msra.mxu0 0.0
        %1270 = vmatprep.subr.mxu0 0.0
        %1271 = vmatpush2.msra.mxu0 0.0
        %1272 = vmatprep.subr.mxu0 0.0
        %1273 = vmatpush2.msra.mxu0 0.0
        %1274 = vmatprep.subr.mxu0 0.0
        %1275 = vmatpush2.msra.mxu0 0.0
        %1276 = vmatprep.subr.mxu0 0.0
        %1277 = vmatpush2.msra.mxu0 0.0
        %1278 = vmatprep.subr.mxu0 0.0
        %1279 = vmatpush2.msra.mxu0 0.0
        %1280 = vmatprep.subr.mxu0 0.0
        %1281 = vmatpush2.msra.mxu0 0.0
        %1282 = vmatprep.subr.mxu0 0.0
        %1283 = vmatpush2.msra.mxu0 0.0
        %1284 = vmatprep.subr.mxu0 0.0
        %1285 = vmatpush2.msra.mxu0 0.0
        %1286 = vmatprep.subr.mxu0 0.0
        %1287 = vmatpush2.msra.mxu0 0.0
        %1288 = vmatprep.mubr.f32.mxu0 0.0
        %1289 = vmatmul.mubr.f32.gmra.mxu0 %v1154
        %v1290 = vpop.f32.mrf.mxu0
        %v1291 = vadd.f32 0.0, %v1290
        %v1292 = vpop.f32.mrf.mxu0
        %1293 = vmatprep.mubr.f32.mxu0 0.0
        %1294 = vmatmul.mubr.f32.gmra.mxu0 %v1156
        %v1295 = vpop.f32.mrf.mxu0
        %v1296 = vadd.f32 0.0, %v1295
        %v1297 = vpop.f32.mrf.mxu0
        %1298 = vmatprep.mubr.f32.mxu0 0.0
        %1299 = vmatmul.mubr.f32.gmra.mxu0 %v1159
        %v1300 = vpop.f32.mrf.mxu0
        %v1301 = vadd.f32 0.0, %v1300
        %v1302 = vpop.f32.mrf.mxu0
        %1303 = vmatprep.mubr.f32.mxu0 0.0
        %1304 = vmatmul.mubr.f32.gmra.mxu0 %v1161
        %v1305 = vpop.f32.mrf.mxu0
        %v1306 = vadd.f32 0.0, %v1305
        %v1307 = vpop.f32.mrf.mxu0
        %1308 = vmatprep.mubr.f32.mxu0 0.0
        %1309 = vmatmul.mubr.f32.gmra.mxu0 %v1164
        %v1310 = vpop.f32.mrf.mxu0
        %v1311 = vadd.f32 0.0, %v1310
        %v1312 = vpop.f32.mrf.mxu0
        %1313 = vmatprep.mubr.f32.mxu0 0.0
        %1314 = vmatmul.mubr.f32.gmra.mxu0 %v1166
        %v1315 = vpop.f32.mrf.mxu0
        %v1316 = vadd.f32 0.0, %v1315
        %v1317 = vpop.f32.mrf.mxu0
        %1318 = vmatprep.mubr.f32.mxu0 0.0
        %1319 = vmatmul.mubr.f32.gmra.mxu0 %v1169
        %v1320 = vpop.f32.mrf.mxu0
        %v1321 = vadd.f32 0.0, %v1320
        %v1322 = vpop.f32.mrf.mxu0
        %1323 = vmatprep.mubr.f32.mxu0 0.0
        %1324 = vmatmul.mubr.f32.gmra.mxu0 %v1171
        %v1325 = vpop.f32.mrf.mxu0
        %v1326 = vadd.f32 0.0, %v1325
        %v1327 = vpop.f32.mrf.mxu0
        %1328 = vmatprep.mubr.f32.mxu0 0.0
        %1329 = vmatmul.mubr.f32.gmra.mxu0 %v1174
        %v1330 = vpop.f32.mrf.mxu0
        %v1331 = vadd.f32 0.0, %v1330
        %v1332 = vpop.f32.mrf.mxu0
        %1333 = vmatprep.mubr.f32.mxu0 0.0
        %1334 = vmatmul.mubr.f32.gmra.mxu0 %v1176
        %v1335 = vpop.f32.mrf.mxu0
        %v1336 = vadd.f32 0.0, %v1335
        %v1337 = vpop.f32.mrf.mxu0
        %1338 = vmatprep.mubr.f32.mxu0 0.0
        %1339 = vmatmul.mubr.f32.gmra.mxu0 %v1179
        %v1340 = vpop.f32.mrf.mxu0
        %v1341 = vadd.f32 0.0, %v1340
        %v1342 = vpop.f32.mrf.mxu0
        %1343 = vmatprep.mubr.f32.mxu0 0.0
        %1344 = vmatmul.mubr.f32.gmra.mxu0 %v1181
        %v1345 = vpop.f32.mrf.mxu0
        %v1346 = vadd.f32 0.0, %v1345
        %v1347 = vpop.f32.mrf.mxu0
        %1348 = vmatprep.mubr.f32.mxu0 0.0
        %1349 = vmatmul.mubr.f32.gmra.mxu0 %v1184
        %v1350 = vpop.f32.mrf.mxu0
        %v1351 = vadd.f32 0.0, %v1350
        %v1352 = vpop.f32.mrf.mxu0
        %1353 = vmatprep.mubr.f32.mxu0 0.0
        %1354 = vmatmul.mubr.f32.gmra.mxu0 %v1186
        %v1355 = vpop.f32.mrf.mxu0
        %v1356 = vadd.f32 0.0, %v1355
        %v1357 = vpop.f32.mrf.mxu0
        %1358 = vmatprep.mubr.f32.mxu0 0.0
        %1359 = vmatmul.mubr.f32.gmra.mxu0 %v1189
        %v1360 = vpop.f32.mrf.mxu0
        %v1361 = vadd.f32 0.0, %v1360
        %v1362 = vpop.f32.mrf.mxu0
        %1363 = vmatprep.mubr.f32.mxu0 0.0
        %1364 = vmatmul.mubr.f32.gmra.mxu0 %v1191
        %v1365 = vpop.f32.mrf.mxu0
        %v1366 = vadd.f32 0.0, %v1365
        %v1367 = vpop.f32.mrf.mxu0
        %1368 = vdwg.mxu0
        %v1369 = vadd.f32 %v1112, %v1291
        %v1370 = vadd.f32 %v1113, %v1296
        %v1371 = vadd.f32 %v1114, %v1301
        %v1372 = vadd.f32 %v1115, %v1306
        %v1373 = vadd.f32 %v1116, %v1311
        %v1374 = vadd.f32 %v1117, %v1316
        %v1375 = vadd.f32 %v1118, %v1321
        %v1376 = vadd.f32 %v1119, %v1326
        %v1377 = vadd.f32 %v1120, %v1331
        %v1378 = vadd.f32 %v1121, %v1336
        %v1379 = vadd.f32 %v1122, %v1341
        %v1380 = vadd.f32 %v1123, %v1346
        %v1381 = vadd.f32 %v1124, %v1351
        %v1382 = vadd.f32 %v1125, %v1356
        %v1383 = vadd.f32 %v1126, %v1361
        %v1384 = vadd.f32 %v1127, %v1366
        %v1385 = vrot.slane %v927, 2
        %v1386 = vrot.slane %v928, 2
        %v1387 = vsel %vm690, %v1385, %v1386
        %v1388 = vrot.slane %v929, 2
        %v1389 = vsel %vm690, %v1386, %v1388
        %v1390 = vrot.slane %v930, 2
        %v1391 = vrot.slane %v931, 2
        %v1392 = vsel %vm690, %v1390, %v1391
        %v1393 = vrot.slane %v932, 2
        %v1394 = vsel %vm690, %v1391, %v1393
        %v1395 = vrot.slane %v933, 2
        %v1396 = vrot.slane %v934, 2
        %v1397 = vsel %vm690, %v1395, %v1396
        %v1398 = vrot.slane %v935, 2
        %v1399 = vsel %vm690, %v1396, %v1398
        %v1400 = vrot.slane %v936, 2
        %v1401 = vrot.slane %v937, 2
        %v1402 = vsel %vm690, %v1400, %v1401
        %v1403 = vrot.slane %v938, 2
        %v1404 = vsel %vm690, %v1401, %v1403
        %v1405 = vrot.slane %v939, 2
        %v1406 = vrot.slane %v940, 2
        %v1407 = vsel %vm690, %v1405, %v1406
        %v1408 = vrot.slane %v941, 2
        %v1409 = vsel %vm690, %v1406, %v1408
        %v1410 = vrot.slane %v942, 2
        %v1411 = vrot.slane %v943, 2
        %v1412 = vsel %vm690, %v1410, %v1411
        %v1413 = vrot.slane %v944, 2
        %v1414 = vsel %vm690, %v1411, %v1413
        %v1415 = vrot.slane %v945, 2
        %v1416 = vrot.slane %v946, 2
        %v1417 = vsel %vm690, %v1415, %v1416
        %v1418 = vrot.slane %v947, 2
        %v1419 = vsel %vm690, %v1416, %v1418
        %v1420 = vrot.slane %v948, 2
        %v1421 = vrot.slane %v949, 2
        %v1422 = vsel %vm690, %v1420, %v1421
        %v1423 = vrot.slane %v950, 2
        %v1424 = vsel %vm690, %v1421, %v1423
        %v1441 = vld [vmem:[%s1 + $0x280] sm:$0xff]
        %v1442 = vld [vmem:[%s1 + $0x288] sm:$0xff]
        %v1443 = vld [vmem:[%s1 + $0x290] sm:$0xff]
        %v1444 = vld [vmem:[%s1 + $0x298] sm:$0xff]
        %v1445 = vld [vmem:[%s1 + $0x2a0] sm:$0xff]
        %v1446 = vld [vmem:[%s1 + $0x2a8] sm:$0xff]
        %v1447 = vld [vmem:[%s1 + $0x2b0] sm:$0xff]
        %v1448 = vld [vmem:[%s1 + $0x2b8] sm:$0xff]
        %v1449 = vld [vmem:[%s1 + $0x2c0] sm:$0xff]
        %v1450 = vld [vmem:[%s1 + $0x2c8] sm:$0xff]
        %v1451 = vld [vmem:[%s1 + $0x2d0] sm:$0xff]
        %v1452 = vld [vmem:[%s1 + $0x2d8] sm:$0xff]
        %v1453 = vld [vmem:[%s1 + $0x2e0] sm:$0xff]
        %v1454 = vld [vmem:[%s1 + $0x2e8] sm:$0xff]
        %v1455 = vld [vmem:[%s1 + $0x2f0] sm:$0xff]
        %v1456 = vld [vmem:[%s1 + $0x2f8] sm:$0xff]
        %1457 = vmatprep.subr.mxu0 0.0
        %1458 = vmatpush1.msra.mxu0 %v1456
        %1459 = vmatprep.subr.mxu0 0.0
        %1460 = vmatpush1.msra.mxu0 %v1455
        %1461 = vmatprep.subr.mxu0 0.0
        %1462 = vmatpush1.msra.mxu0 %v1454
        %1463 = vmatprep.subr.mxu0 0.0
        %1464 = vmatpush1.msra.mxu0 %v1453
        %1465 = vmatprep.subr.mxu0 0.0
        %1466 = vmatpush1.msra.mxu0 %v1452
        %1467 = vmatprep.subr.mxu0 0.0
        %1468 = vmatpush1.msra.mxu0 %v1451
        %1469 = vmatprep.subr.mxu0 0.0
        %1470 = vmatpush1.msra.mxu0 %v1450
        %1471 = vmatprep.subr.mxu0 0.0
        %1472 = vmatpush1.msra.mxu0 %v1449
        %1473 = vmatprep.subr.mxu0 0.0
        %1474 = vmatpush1.msra.mxu0 %v1448
        %1475 = vmatprep.subr.mxu0 0.0
        %1476 = vmatpush1.msra.mxu0 %v1447
        %1477 = vmatprep.subr.mxu0 0.0
        %1478 = vmatpush1.msra.mxu0 %v1446
        %1479 = vmatprep.subr.mxu0 0.0
        %1480 = vmatpush1.msra.mxu0 %v1445
        %1481 = vmatprep.subr.mxu0 0.0
        %1482 = vmatpush1.msra.mxu0 %v1444
        %1483 = vmatprep.subr.mxu0 0.0
        %1484 = vmatpush1.msra.mxu0 %v1443
        %1485 = vmatprep.subr.mxu0 0.0
        %1486 = vmatpush1.msra.mxu0 %v1442
        %1487 = vmatprep.subr.mxu0 0.0
        %1488 = vmatpush1.msra.mxu0 %v1441
        %1489 = vmatprep.subr.mxu0 0.0
        %1490 = vmatpush2.msra.mxu0 0.0
        %1491 = vmatprep.subr.mxu0 0.0
        %1492 = vmatpush2.msra.mxu0 0.0
        %1493 = vmatprep.subr.mxu0 0.0
        %1494 = vmatpush2.msra.mxu0 0.0
        %1495 = vmatprep.subr.mxu0 0.0
        %1496 = vmatpush2.msra.mxu0 0.0
        %1497 = vmatprep.subr.mxu0 0.0
        %1498 = vmatpush2.msra.mxu0 0.0
        %1499 = vmatprep.subr.mxu0 0.0
        %1500 = vmatpush2.msra.mxu0 0.0
        %1501 = vmatprep.subr.mxu0 0.0
        %1502 = vmatpush2.msra.mxu0 0.0
        %1503 = vmatprep.subr.mxu0 0.0
        %1504 = vmatpush2.msra.mxu0 0.0
        %1505 = vmatprep.subr.mxu0 0.0
        %1506 = vmatpush2.msra.mxu0 0.0
        %1507 = vmatprep.subr.mxu0 0.0
        %1508 = vmatpush2.msra.mxu0 0.0
        %1509 = vmatprep.subr.mxu0 0.0
        %1510 = vmatpush2.msra.mxu0 0.0
        %1511 = vmatprep.subr.mxu0 0.0
        %1512 = vmatpush2.msra.mxu0 0.0
        %1513 = vmatprep.subr.mxu0 0.0
        %1514 = vmatpush2.msra.mxu0 0.0
        %1515 = vmatprep.subr.mxu0 0.0
        %1516 = vmatpush2.msra.mxu0 0.0
        %1517 = vmatprep.subr.mxu0 0.0
        %1518 = vmatpush2.msra.mxu0 0.0
        %1519 = vmatprep.subr.mxu0 0.0
        %1520 = vmatpush2.msra.mxu0 0.0
        %1521 = vmatprep.mubr.f32.mxu0 0.0
        %1522 = vmatmul.mubr.f32.gmra.mxu0 %v1387
        %v1523 = vpop.f32.mrf.mxu0
        %v1524 = vadd.f32 0.0, %v1523
        %v1525 = vpop.f32.mrf.mxu0
        %1526 = vmatprep.mubr.f32.mxu0 0.0
        %1527 = vmatmul.mubr.f32.gmra.mxu0 %v1389
        %v1528 = vpop.f32.mrf.mxu0
        %v1529 = vadd.f32 0.0, %v1528
        %v1530 = vpop.f32.mrf.mxu0
        %1531 = vmatprep.mubr.f32.mxu0 0.0
        %1532 = vmatmul.mubr.f32.gmra.mxu0 %v1392
        %v1533 = vpop.f32.mrf.mxu0
        %v1534 = vadd.f32 0.0, %v1533
        %v1535 = vpop.f32.mrf.mxu0
        %1536 = vmatprep.mubr.f32.mxu0 0.0
        %1537 = vmatmul.mubr.f32.gmra.mxu0 %v1394
        %v1538 = vpop.f32.mrf.mxu0
        %v1539 = vadd.f32 0.0, %v1538
        %v1540 = vpop.f32.mrf.mxu0
        %1541 = vmatprep.mubr.f32.mxu0 0.0
        %1542 = vmatmul.mubr.f32.gmra.mxu0 %v1397
        %v1543 = vpop.f32.mrf.mxu0
        %v1544 = vadd.f32 0.0, %v1543
        %v1545 = vpop.f32.mrf.mxu0
        %1546 = vmatprep.mubr.f32.mxu0 0.0
        %1547 = vmatmul.mubr.f32.gmra.mxu0 %v1399
        %v1548 = vpop.f32.mrf.mxu0
        %v1549 = vadd.f32 0.0, %v1548
        %v1550 = vpop.f32.mrf.mxu0
        %1551 = vmatprep.mubr.f32.mxu0 0.0
        %1552 = vmatmul.mubr.f32.gmra.mxu0 %v1402
        %v1553 = vpop.f32.mrf.mxu0
        %v1554 = vadd.f32 0.0, %v1553
        %v1555 = vpop.f32.mrf.mxu0
        %1556 = vmatprep.mubr.f32.mxu0 0.0
        %1557 = vmatmul.mubr.f32.gmra.mxu0 %v1404
        %v1558 = vpop.f32.mrf.mxu0
        %v1559 = vadd.f32 0.0, %v1558
        %v1560 = vpop.f32.mrf.mxu0
        %1561 = vmatprep.mubr.f32.mxu0 0.0
        %1562 = vmatmul.mubr.f32.gmra.mxu0 %v1407
        %v1563 = vpop.f32.mrf.mxu0
        %v1564 = vadd.f32 0.0, %v1563
        %v1565 = vpop.f32.mrf.mxu0
        %1566 = vmatprep.mubr.f32.mxu0 0.0
        %1567 = vmatmul.mubr.f32.gmra.mxu0 %v1409
        %v1568 = vpop.f32.mrf.mxu0
        %v1569 = vadd.f32 0.0, %v1568
        %v1570 = vpop.f32.mrf.mxu0
        %1571 = vmatprep.mubr.f32.mxu0 0.0
        %1572 = vmatmul.mubr.f32.gmra.mxu0 %v1412
        %v1573 = vpop.f32.mrf.mxu0
        %v1574 = vadd.f32 0.0, %v1573
        %v1575 = vpop.f32.mrf.mxu0
        %1576 = vmatprep.mubr.f32.mxu0 0.0
        %1577 = vmatmul.mubr.f32.gmra.mxu0 %v1414
        %v1578 = vpop.f32.mrf.mxu0
        %v1579 = vadd.f32 0.0, %v1578
        %v1580 = vpop.f32.mrf.mxu0
        %1581 = vmatprep.mubr.f32.mxu0 0.0
        %1582 = vmatmul.mubr.f32.gmra.mxu0 %v1417
        %v1583 = vpop.f32.mrf.mxu0
        %v1584 = vadd.f32 0.0, %v1583
        %v1585 = vpop.f32.mrf.mxu0
        %1586 = vmatprep.mubr.f32.mxu0 0.0
        %1587 = vmatmul.mubr.f32.gmra.mxu0 %v1419
        %v1588 = vpop.f32.mrf.mxu0
        %v1589 = vadd.f32 0.0, %v1588
        %v1590 = vpop.f32.mrf.mxu0
        %1591 = vmatprep.mubr.f32.mxu0 0.0
        %1592 = vmatmul.mubr.f32.gmra.mxu0 %v1422
        %v1593 = vpop.f32.mrf.mxu0
        %v1594 = vadd.f32 0.0, %v1593
        %v1595 = vpop.f32.mrf.mxu0
        %1596 = vmatprep.mubr.f32.mxu0 0.0
        %1597 = vmatmul.mubr.f32.gmra.mxu0 %v1424
        %v1598 = vpop.f32.mrf.mxu0
        %v1599 = vadd.f32 0.0, %v1598
        %v1600 = vpop.f32.mrf.mxu0
        %1601 = vdwg.mxu0
        %v1602 = vadd.f32 %v1369, %v1524
        %v1603 = vadd.f32 %v1370, %v1529
        %v1604 = vadd.f32 %v1371, %v1534
        %v1605 = vadd.f32 %v1372, %v1539
        %v1606 = vadd.f32 %v1373, %v1544
        %v1607 = vadd.f32 %v1374, %v1549
        %v1608 = vadd.f32 %v1375, %v1554
        %v1609 = vadd.f32 %v1376, %v1559
        %v1610 = vadd.f32 %v1377, %v1564
        %v1611 = vadd.f32 %v1378, %v1569
        %v1612 = vadd.f32 %v1379, %v1574
        %v1613 = vadd.f32 %v1380, %v1579
        %v1614 = vadd.f32 %v1381, %v1584
        %v1615 = vadd.f32 %v1382, %v1589
        %v1616 = vadd.f32 %v1383, %v1594
        %v1617 = vadd.f32 %v1384, %v1599
        %s1618 = sadd.s32 %s260, 2
        %s1619 = smul.u32 %s1618, 24
        %s1620 = scalar_lea.vmem %s256, %s1619
        %v1621 = vld [vmem:[%s1620] sm:$0xff]
        %v1622 = vld [vmem:[%s1620 + $0x8] sm:$0xff]
        %v1623 = vld [vmem:[%s1620 + $0x10] sm:$0x3]
        %v1624 = vld [vmem:[%s1620 + $0x18] sm:$0xff]
        %v1625 = vld [vmem:[%s1620 + $0x20] sm:$0xff]
        %v1626 = vld [vmem:[%s1620 + $0x28] sm:$0x3]
        %v1627 = vld [vmem:[%s1620 + $0x30] sm:$0xff]
        %v1628 = vld [vmem:[%s1620 + $0x38] sm:$0xff]
        %v1629 = vld [vmem:[%s1620 + $0x40] sm:$0x3]
        %v1630 = vld [vmem:[%s1620 + $0x48] sm:$0xff]
        %v1631 = vld [vmem:[%s1620 + $0x50] sm:$0xff]
        %v1632 = vld [vmem:[%s1620 + $0x58] sm:$0x3]
        %v1633 = vld [vmem:[%s1620 + $0x60] sm:$0xff]
        %v1634 = vld [vmem:[%s1620 + $0x68] sm:$0xff]
        %v1635 = vld [vmem:[%s1620 + $0x70] sm:$0x3]
        %v1636 = vld [vmem:[%s1620 + $0x78] sm:$0xff]
        %v1637 = vld [vmem:[%s1620 + $0x80] sm:$0xff]
        %v1638 = vld [vmem:[%s1620 + $0x88] sm:$0x3]
        %v1639 = vld [vmem:[%s1620 + $0x90] sm:$0xff]
        %v1640 = vld [vmem:[%s1620 + $0x98] sm:$0xff]
        %v1641 = vld [vmem:[%s1620 + $0xa0] sm:$0x3]
        %v1642 = vld [vmem:[%s1620 + $0xa8] sm:$0xff]
        %v1643 = vld [vmem:[%s1620 + $0xb0] sm:$0xff]
        %v1644 = vld [vmem:[%s1620 + $0xb8] sm:$0x3]
        %v1645 = vld [vmem:[%s1 + $0x300] sm:$0xff]
        %v1646 = vld [vmem:[%s1 + $0x308] sm:$0xff]
        %v1647 = vld [vmem:[%s1 + $0x310] sm:$0xff]
        %v1648 = vld [vmem:[%s1 + $0x318] sm:$0xff]
        %v1649 = vld [vmem:[%s1 + $0x320] sm:$0xff]
        %v1650 = vld [vmem:[%s1 + $0x328] sm:$0xff]
        %v1651 = vld [vmem:[%s1 + $0x330] sm:$0xff]
        %v1652 = vld [vmem:[%s1 + $0x338] sm:$0xff]
        %v1653 = vld [vmem:[%s1 + $0x340] sm:$0xff]
        %v1654 = vld [vmem:[%s1 + $0x348] sm:$0xff]
        %v1655 = vld [vmem:[%s1 + $0x350] sm:$0xff]
        %v1656 = vld [vmem:[%s1 + $0x358] sm:$0xff]
        %v1657 = vld [vmem:[%s1 + $0x360] sm:$0xff]
        %v1658 = vld [vmem:[%s1 + $0x368] sm:$0xff]
        %v1659 = vld [vmem:[%s1 + $0x370] sm:$0xff]
        %v1660 = vld [vmem:[%s1 + $0x378] sm:$0xff]
        %1661 = vmatprep.subr.mxu0 0.0
        %1662 = vmatpush1.msra.mxu0 %v1660
        %1663 = vmatprep.subr.mxu0 0.0
        %1664 = vmatpush1.msra.mxu0 %v1659
        %1665 = vmatprep.subr.mxu0 0.0
        %1666 = vmatpush1.msra.mxu0 %v1658
        %1667 = vmatprep.subr.mxu0 0.0
        %1668 = vmatpush1.msra.mxu0 %v1657
        %1669 = vmatprep.subr.mxu0 0.0
        %1670 = vmatpush1.msra.mxu0 %v1656
        %1671 = vmatprep.subr.mxu0 0.0
        %1672 = vmatpush1.msra.mxu0 %v1655
        %1673 = vmatprep.subr.mxu0 0.0
        %1674 = vmatpush1.msra.mxu0 %v1654
        %1675 = vmatprep.subr.mxu0 0.0
        %1676 = vmatpush1.msra.mxu0 %v1653
        %1677 = vmatprep.subr.mxu0 0.0
        %1678 = vmatpush1.msra.mxu0 %v1652
        %1679 = vmatprep.subr.mxu0 0.0
        %1680 = vmatpush1.msra.mxu0 %v1651
        %1681 = vmatprep.subr.mxu0 0.0
        %1682 = vmatpush1.msra.mxu0 %v1650
        %1683 = vmatprep.subr.mxu0 0.0
        %1684 = vmatpush1.msra.mxu0 %v1649
        %1685 = vmatprep.subr.mxu0 0.0
        %1686 = vmatpush1.msra.mxu0 %v1648
        %1687 = vmatprep.subr.mxu0 0.0
        %1688 = vmatpush1.msra.mxu0 %v1647
        %1689 = vmatprep.subr.mxu0 0.0
        %1690 = vmatpush1.msra.mxu0 %v1646
        %1691 = vmatprep.subr.mxu0 0.0
        %1692 = vmatpush1.msra.mxu0 %v1645
        %1693 = vmatprep.subr.mxu0 0.0
        %1694 = vmatpush2.msra.mxu0 0.0
        %1695 = vmatprep.subr.mxu0 0.0
        %1696 = vmatpush2.msra.mxu0 0.0
        %1697 = vmatprep.subr.mxu0 0.0
        %1698 = vmatpush2.msra.mxu0 0.0
        %1699 = vmatprep.subr.mxu0 0.0
        %1700 = vmatpush2.msra.mxu0 0.0
        %1701 = vmatprep.subr.mxu0 0.0
        %1702 = vmatpush2.msra.mxu0 0.0
        %1703 = vmatprep.subr.mxu0 0.0
        %1704 = vmatpush2.msra.mxu0 0.0
        %1705 = vmatprep.subr.mxu0 0.0
        %1706 = vmatpush2.msra.mxu0 0.0
        %1707 = vmatprep.subr.mxu0 0.0
        %1708 = vmatpush2.msra.mxu0 0.0
        %1709 = vmatprep.subr.mxu0 0.0
        %1710 = vmatpush2.msra.mxu0 0.0
        %1711 = vmatprep.subr.mxu0 0.0
        %1712 = vmatpush2.msra.mxu0 0.0
        %1713 = vmatprep.subr.mxu0 0.0
        %1714 = vmatpush2.msra.mxu0 0.0
        %1715 = vmatprep.subr.mxu0 0.0
        %1716 = vmatpush2.msra.mxu0 0.0
        %1717 = vmatprep.subr.mxu0 0.0
        %1718 = vmatpush2.msra.mxu0 0.0
        %1719 = vmatprep.subr.mxu0 0.0
        %1720 = vmatpush2.msra.mxu0 0.0
        %1721 = vmatprep.subr.mxu0 0.0
        %1722 = vmatpush2.msra.mxu0 0.0
        %1723 = vmatprep.subr.mxu0 0.0
        %1724 = vmatpush2.msra.mxu0 0.0
        %1725 = vmatprep.mubr.f32.mxu0 0.0
        %1726 = vmatmul.mubr.f32.gmra.mxu0 %v1621
        %v1727 = vpop.f32.mrf.mxu0
        %v1728 = vadd.f32 0.0, %v1727
        %v1729 = vpop.f32.mrf.mxu0
        %1730 = vmatprep.mubr.f32.mxu0 0.0
        %1731 = vmatmul.mubr.f32.gmra.mxu0 %v1622
        %v1732 = vpop.f32.mrf.mxu0
        %v1733 = vadd.f32 0.0, %v1732
        %v1734 = vpop.f32.mrf.mxu0
        %1735 = vmatprep.mubr.f32.mxu0 0.0
        %1736 = vmatmul.mubr.f32.gmra.mxu0 %v1624
        %v1737 = vpop.f32.mrf.mxu0
        %v1738 = vadd.f32 0.0, %v1737
        %v1739 = vpop.f32.mrf.mxu0
        %1740 = vmatprep.mubr.f32.mxu0 0.0
        %1741 = vmatmul.mubr.f32.gmra.mxu0 %v1625
        %v1742 = vpop.f32.mrf.mxu0
        %v1743 = vadd.f32 0.0, %v1742
        %v1744 = vpop.f32.mrf.mxu0
        %1745 = vmatprep.mubr.f32.mxu0 0.0
        %1746 = vmatmul.mubr.f32.gmra.mxu0 %v1627
        %v1747 = vpop.f32.mrf.mxu0
        %v1748 = vadd.f32 0.0, %v1747
        %v1749 = vpop.f32.mrf.mxu0
        %1750 = vmatprep.mubr.f32.mxu0 0.0
        %1751 = vmatmul.mubr.f32.gmra.mxu0 %v1628
        %v1752 = vpop.f32.mrf.mxu0
        %v1753 = vadd.f32 0.0, %v1752
        %v1754 = vpop.f32.mrf.mxu0
        %1755 = vmatprep.mubr.f32.mxu0 0.0
        %1756 = vmatmul.mubr.f32.gmra.mxu0 %v1630
        %v1757 = vpop.f32.mrf.mxu0
        %v1758 = vadd.f32 0.0, %v1757
        %v1759 = vpop.f32.mrf.mxu0
        %1760 = vmatprep.mubr.f32.mxu0 0.0
        %1761 = vmatmul.mubr.f32.gmra.mxu0 %v1631
        %v1762 = vpop.f32.mrf.mxu0
        %v1763 = vadd.f32 0.0, %v1762
        %v1764 = vpop.f32.mrf.mxu0
        %1765 = vmatprep.mubr.f32.mxu0 0.0
        %1766 = vmatmul.mubr.f32.gmra.mxu0 %v1633
        %v1767 = vpop.f32.mrf.mxu0
        %v1768 = vadd.f32 0.0, %v1767
        %v1769 = vpop.f32.mrf.mxu0
        %1770 = vmatprep.mubr.f32.mxu0 0.0
        %1771 = vmatmul.mubr.f32.gmra.mxu0 %v1634
        %v1772 = vpop.f32.mrf.mxu0
        %v1773 = vadd.f32 0.0, %v1772
        %v1774 = vpop.f32.mrf.mxu0
        %1775 = vmatprep.mubr.f32.mxu0 0.0
        %1776 = vmatmul.mubr.f32.gmra.mxu0 %v1636
        %v1777 = vpop.f32.mrf.mxu0
        %v1778 = vadd.f32 0.0, %v1777
        %v1779 = vpop.f32.mrf.mxu0
        %1780 = vmatprep.mubr.f32.mxu0 0.0
        %1781 = vmatmul.mubr.f32.gmra.mxu0 %v1637
        %v1782 = vpop.f32.mrf.mxu0
        %v1783 = vadd.f32 0.0, %v1782
        %v1784 = vpop.f32.mrf.mxu0
        %1785 = vmatprep.mubr.f32.mxu0 0.0
        %1786 = vmatmul.mubr.f32.gmra.mxu0 %v1639
        %v1787 = vpop.f32.mrf.mxu0
        %v1788 = vadd.f32 0.0, %v1787
        %v1789 = vpop.f32.mrf.mxu0
        %1790 = vmatprep.mubr.f32.mxu0 0.0
        %1791 = vmatmul.mubr.f32.gmra.mxu0 %v1640
        %v1792 = vpop.f32.mrf.mxu0
        %v1793 = vadd.f32 0.0, %v1792
        %v1794 = vpop.f32.mrf.mxu0
        %1795 = vmatprep.mubr.f32.mxu0 0.0
        %1796 = vmatmul.mubr.f32.gmra.mxu0 %v1642
        %v1797 = vpop.f32.mrf.mxu0
        %v1798 = vadd.f32 0.0, %v1797
        %v1799 = vpop.f32.mrf.mxu0
        %1800 = vmatprep.mubr.f32.mxu0 0.0
        %1801 = vmatmul.mubr.f32.gmra.mxu0 %v1643
        %v1802 = vpop.f32.mrf.mxu0
        %v1803 = vadd.f32 0.0, %v1802
        %v1804 = vpop.f32.mrf.mxu0
        %1805 = vdwg.mxu0
        %v1806 = vadd.f32 %v1602, %v1728
        %v1807 = vadd.f32 %v1603, %v1733
        %v1808 = vadd.f32 %v1604, %v1738
        %v1809 = vadd.f32 %v1605, %v1743
        %v1810 = vadd.f32 %v1606, %v1748
        %v1811 = vadd.f32 %v1607, %v1753
        %v1812 = vadd.f32 %v1608, %v1758
        %v1813 = vadd.f32 %v1609, %v1763
        %v1814 = vadd.f32 %v1610, %v1768
        %v1815 = vadd.f32 %v1611, %v1773
        %v1816 = vadd.f32 %v1612, %v1778
        %v1817 = vadd.f32 %v1613, %v1783
        %v1818 = vadd.f32 %v1614, %v1788
        %v1819 = vadd.f32 %v1615, %v1793
        %v1820 = vadd.f32 %v1616, %v1798
        %v1821 = vadd.f32 %v1617, %v1803
        %v1846 = vrot.slane %v1621, 1
        %v1847 = vrot.slane %v1622, 1
        %v1848 = vsel %vm327, %v1846, %v1847
        %v1849 = vrot.slane %v1623, 1
        %v1850 = vsel %vm327, %v1847, %v1849
        %v1851 = vrot.slane %v1624, 1
        %v1852 = vrot.slane %v1625, 1
        %v1853 = vsel %vm327, %v1851, %v1852
        %v1854 = vrot.slane %v1626, 1
        %v1855 = vsel %vm327, %v1852, %v1854
        %v1856 = vrot.slane %v1627, 1
        %v1857 = vrot.slane %v1628, 1
        %v1858 = vsel %vm327, %v1856, %v1857
        %v1859 = vrot.slane %v1629, 1
        %v1860 = vsel %vm327, %v1857, %v1859
        %v1861 = vrot.slane %v1630, 1
        %v1862 = vrot.slane %v1631, 1
        %v1863 = vsel %vm327, %v1861, %v1862
        %v1864 = vrot.slane %v1632, 1
        %v1865 = vsel %vm327, %v1862, %v1864
        %v1866 = vrot.slane %v1633, 1
        %v1867 = vrot.slane %v1634, 1
        %v1868 = vsel %vm327, %v1866, %v1867
        %v1869 = vrot.slane %v1635, 1
        %v1870 = vsel %vm327, %v1867, %v1869
        %v1871 = vrot.slane %v1636, 1
        %v1872 = vrot.slane %v1637, 1
        %v1873 = vsel %vm327, %v1871, %v1872
        %v1874 = vrot.slane %v1638, 1
        %v1875 = vsel %vm327, %v1872, %v1874
        %v1876 = vrot.slane %v1639, 1
        %v1877 = vrot.slane %v1640, 1
        %v1878 = vsel %vm327, %v1876, %v1877
        %v1879 = vrot.slane %v1641, 1
        %v1880 = vsel %vm327, %v1877, %v1879
        %v1881 = vrot.slane %v1642, 1
        %v1882 = vrot.slane %v1643, 1
        %v1883 = vsel %vm327, %v1881, %v1882
        %v1884 = vrot.slane %v1644, 1
        %v1885 = vsel %vm327, %v1882, %v1884
        %v1902 = vld [vmem:[%s1 + $0x380] sm:$0xff]
        %v1903 = vld [vmem:[%s1 + $0x388] sm:$0xff]
        %v1904 = vld [vmem:[%s1 + $0x390] sm:$0xff]
        %v1905 = vld [vmem:[%s1 + $0x398] sm:$0xff]
        %v1906 = vld [vmem:[%s1 + $0x3a0] sm:$0xff]
        %v1907 = vld [vmem:[%s1 + $0x3a8] sm:$0xff]
        %v1908 = vld [vmem:[%s1 + $0x3b0] sm:$0xff]
        %v1909 = vld [vmem:[%s1 + $0x3b8] sm:$0xff]
        %v1910 = vld [vmem:[%s1 + $0x3c0] sm:$0xff]
        %v1911 = vld [vmem:[%s1 + $0x3c8] sm:$0xff]
        %v1912 = vld [vmem:[%s1 + $0x3d0] sm:$0xff]
        %v1913 = vld [vmem:[%s1 + $0x3d8] sm:$0xff]
        %v1914 = vld [vmem:[%s1 + $0x3e0] sm:$0xff]
        %v1915 = vld [vmem:[%s1 + $0x3e8] sm:$0xff]
        %v1916 = vld [vmem:[%s1 + $0x3f0] sm:$0xff]
        %v1917 = vld [vmem:[%s1 + $0x3f8] sm:$0xff]
        %1918 = vmatprep.subr.mxu0 0.0
        %1919 = vmatpush1.msra.mxu0 %v1917
        %1920 = vmatprep.subr.mxu0 0.0
        %1921 = vmatpush1.msra.mxu0 %v1916
        %1922 = vmatprep.subr.mxu0 0.0
        %1923 = vmatpush1.msra.mxu0 %v1915
        %1924 = vmatprep.subr.mxu0 0.0
        %1925 = vmatpush1.msra.mxu0 %v1914
        %1926 = vmatprep.subr.mxu0 0.0
        %1927 = vmatpush1.msra.mxu0 %v1913
        %1928 = vmatprep.subr.mxu0 0.0
        %1929 = vmatpush1.msra.mxu0 %v1912
        %1930 = vmatprep.subr.mxu0 0.0
        %1931 = vmatpush1.msra.mxu0 %v1911
        %1932 = vmatprep.subr.mxu0 0.0
        %1933 = vmatpush1.msra.mxu0 %v1910
        %1934 = vmatprep.subr.mxu0 0.0
        %1935 = vmatpush1.msra.mxu0 %v1909
        %1936 = vmatprep.subr.mxu0 0.0
        %1937 = vmatpush1.msra.mxu0 %v1908
        %1938 = vmatprep.subr.mxu0 0.0
        %1939 = vmatpush1.msra.mxu0 %v1907
        %1940 = vmatprep.subr.mxu0 0.0
        %1941 = vmatpush1.msra.mxu0 %v1906
        %1942 = vmatprep.subr.mxu0 0.0
        %1943 = vmatpush1.msra.mxu0 %v1905
        %1944 = vmatprep.subr.mxu0 0.0
        %1945 = vmatpush1.msra.mxu0 %v1904
        %1946 = vmatprep.subr.mxu0 0.0
        %1947 = vmatpush1.msra.mxu0 %v1903
        %1948 = vmatprep.subr.mxu0 0.0
        %1949 = vmatpush1.msra.mxu0 %v1902
        %1950 = vmatprep.subr.mxu0 0.0
        %1951 = vmatpush2.msra.mxu0 0.0
        %1952 = vmatprep.subr.mxu0 0.0
        %1953 = vmatpush2.msra.mxu0 0.0
        %1954 = vmatprep.subr.mxu0 0.0
        %1955 = vmatpush2.msra.mxu0 0.0
        %1956 = vmatprep.subr.mxu0 0.0
        %1957 = vmatpush2.msra.mxu0 0.0
        %1958 = vmatprep.subr.mxu0 0.0
        %1959 = vmatpush2.msra.mxu0 0.0
        %1960 = vmatprep.subr.mxu0 0.0
        %1961 = vmatpush2.msra.mxu0 0.0
        %1962 = vmatprep.subr.mxu0 0.0
        %1963 = vmatpush2.msra.mxu0 0.0
        %1964 = vmatprep.subr.mxu0 0.0
        %1965 = vmatpush2.msra.mxu0 0.0
        %1966 = vmatprep.subr.mxu0 0.0
        %1967 = vmatpush2.msra.mxu0 0.0
        %1968 = vmatprep.subr.mxu0 0.0
        %1969 = vmatpush2.msra.mxu0 0.0
        %1970 = vmatprep.subr.mxu0 0.0
        %1971 = vmatpush2.msra.mxu0 0.0
        %1972 = vmatprep.subr.mxu0 0.0
        %1973 = vmatpush2.msra.mxu0 0.0
        %1974 = vmatprep.subr.mxu0 0.0
        %1975 = vmatpush2.msra.mxu0 0.0
        %1976 = vmatprep.subr.mxu0 0.0
        %1977 = vmatpush2.msra.mxu0 0.0
        %1978 = vmatprep.subr.mxu0 0.0
        %1979 = vmatpush2.msra.mxu0 0.0
        %1980 = vmatprep.subr.mxu0 0.0
        %1981 = vmatpush2.msra.mxu0 0.0
        %1982 = vmatprep.mubr.f32.mxu0 0.0
        %1983 = vmatmul.mubr.f32.gmra.mxu0 %v1848
        %v1984 = vpop.f32.mrf.mxu0
        %v1985 = vadd.f32 0.0, %v1984
        %v1986 = vpop.f32.mrf.mxu0
        %1987 = vmatprep.mubr.f32.mxu0 0.0
        %1988 = vmatmul.mubr.f32.gmra.mxu0 %v1850
        %v1989 = vpop.f32.mrf.mxu0
        %v1990 = vadd.f32 0.0, %v1989
        %v1991 = vpop.f32.mrf.mxu0
        %1992 = vmatprep.mubr.f32.mxu0 0.0
        %1993 = vmatmul.mubr.f32.gmra.mxu0 %v1853
        %v1994 = vpop.f32.mrf.mxu0
        %v1995 = vadd.f32 0.0, %v1994
        %v1996 = vpop.f32.mrf.mxu0
        %1997 = vmatprep.mubr.f32.mxu0 0.0
        %1998 = vmatmul.mubr.f32.gmra.mxu0 %v1855
        %v1999 = vpop.f32.mrf.mxu0
        %v2000 = vadd.f32 0.0, %v1999
        %v2001 = vpop.f32.mrf.mxu0
        %2002 = vmatprep.mubr.f32.mxu0 0.0
        %2003 = vmatmul.mubr.f32.gmra.mxu0 %v1858
        %v2004 = vpop.f32.mrf.mxu0
        %v2005 = vadd.f32 0.0, %v2004
        %v2006 = vpop.f32.mrf.mxu0
        %2007 = vmatprep.mubr.f32.mxu0 0.0
        %2008 = vmatmul.mubr.f32.gmra.mxu0 %v1860
        %v2009 = vpop.f32.mrf.mxu0
        %v2010 = vadd.f32 0.0, %v2009
        %v2011 = vpop.f32.mrf.mxu0
        %2012 = vmatprep.mubr.f32.mxu0 0.0
        %2013 = vmatmul.mubr.f32.gmra.mxu0 %v1863
        %v2014 = vpop.f32.mrf.mxu0
        %v2015 = vadd.f32 0.0, %v2014
        %v2016 = vpop.f32.mrf.mxu0
        %2017 = vmatprep.mubr.f32.mxu0 0.0
        %2018 = vmatmul.mubr.f32.gmra.mxu0 %v1865
        %v2019 = vpop.f32.mrf.mxu0
        %v2020 = vadd.f32 0.0, %v2019
        %v2021 = vpop.f32.mrf.mxu0
        %2022 = vmatprep.mubr.f32.mxu0 0.0
        %2023 = vmatmul.mubr.f32.gmra.mxu0 %v1868
        %v2024 = vpop.f32.mrf.mxu0
        %v2025 = vadd.f32 0.0, %v2024
        %v2026 = vpop.f32.mrf.mxu0
        %2027 = vmatprep.mubr.f32.mxu0 0.0
        %2028 = vmatmul.mubr.f32.gmra.mxu0 %v1870
        %v2029 = vpop.f32.mrf.mxu0
        %v2030 = vadd.f32 0.0, %v2029
        %v2031 = vpop.f32.mrf.mxu0
        %2032 = vmatprep.mubr.f32.mxu0 0.0
        %2033 = vmatmul.mubr.f32.gmra.mxu0 %v1873
        %v2034 = vpop.f32.mrf.mxu0
        %v2035 = vadd.f32 0.0, %v2034
        %v2036 = vpop.f32.mrf.mxu0
        %2037 = vmatprep.mubr.f32.mxu0 0.0
        %2038 = vmatmul.mubr.f32.gmra.mxu0 %v1875
        %v2039 = vpop.f32.mrf.mxu0
        %v2040 = vadd.f32 0.0, %v2039
        %v2041 = vpop.f32.mrf.mxu0
        %2042 = vmatprep.mubr.f32.mxu0 0.0
        %2043 = vmatmul.mubr.f32.gmra.mxu0 %v1878
        %v2044 = vpop.f32.mrf.mxu0
        %v2045 = vadd.f32 0.0, %v2044
        %v2046 = vpop.f32.mrf.mxu0
        %2047 = vmatprep.mubr.f32.mxu0 0.0
        %2048 = vmatmul.mubr.f32.gmra.mxu0 %v1880
        %v2049 = vpop.f32.mrf.mxu0
        %v2050 = vadd.f32 0.0, %v2049
        %v2051 = vpop.f32.mrf.mxu0
        %2052 = vmatprep.mubr.f32.mxu0 0.0
        %2053 = vmatmul.mubr.f32.gmra.mxu0 %v1883
        %v2054 = vpop.f32.mrf.mxu0
        %v2055 = vadd.f32 0.0, %v2054
        %v2056 = vpop.f32.mrf.mxu0
        %2057 = vmatprep.mubr.f32.mxu0 0.0
        %2058 = vmatmul.mubr.f32.gmra.mxu0 %v1885
        %v2059 = vpop.f32.mrf.mxu0
        %v2060 = vadd.f32 0.0, %v2059
        %v2061 = vpop.f32.mrf.mxu0
        %2062 = vdwg.mxu0
        %v2063 = vadd.f32 %v1806, %v1985
        %v2064 = vadd.f32 %v1807, %v1990
        %v2065 = vadd.f32 %v1808, %v1995
        %v2066 = vadd.f32 %v1809, %v2000
        %v2067 = vadd.f32 %v1810, %v2005
        %v2068 = vadd.f32 %v1811, %v2010
        %v2069 = vadd.f32 %v1812, %v2015
        %v2070 = vadd.f32 %v1813, %v2020
        %v2071 = vadd.f32 %v1814, %v2025
        %v2072 = vadd.f32 %v1815, %v2030
        %v2073 = vadd.f32 %v1816, %v2035
        %v2074 = vadd.f32 %v1817, %v2040
        %v2075 = vadd.f32 %v1818, %v2045
        %v2076 = vadd.f32 %v1819, %v2050
        %v2077 = vadd.f32 %v1820, %v2055
        %v2078 = vadd.f32 %v1821, %v2060
        %v2079 = vrot.slane %v1621, 2
        %v2080 = vrot.slane %v1622, 2
        %v2081 = vsel %vm690, %v2079, %v2080
        %v2082 = vrot.slane %v1623, 2
        %v2083 = vsel %vm690, %v2080, %v2082
        %v2084 = vrot.slane %v1624, 2
        %v2085 = vrot.slane %v1625, 2
        %v2086 = vsel %vm690, %v2084, %v2085
        %v2087 = vrot.slane %v1626, 2
        %v2088 = vsel %vm690, %v2085, %v2087
        %v2089 = vrot.slane %v1627, 2
        %v2090 = vrot.slane %v1628, 2
        %v2091 = vsel %vm690, %v2089, %v2090
        %v2092 = vrot.slane %v1629, 2
        %v2093 = vsel %vm690, %v2090, %v2092
        %v2094 = vrot.slane %v1630, 2
        %v2095 = vrot.slane %v1631, 2
        %v2096 = vsel %vm690, %v2094, %v2095
        %v2097 = vrot.slane %v1632, 2
        %v2098 = vsel %vm690, %v2095, %v2097
        %v2099 = vrot.slane %v1633, 2
        %v2100 = vrot.slane %v1634, 2
        %v2101 = vsel %vm690, %v2099, %v2100
        %v2102 = vrot.slane %v1635, 2
        %v2103 = vsel %vm690, %v2100, %v2102
        %v2104 = vrot.slane %v1636, 2
        %v2105 = vrot.slane %v1637, 2
        %v2106 = vsel %vm690, %v2104, %v2105
        %v2107 = vrot.slane %v1638, 2
        %v2108 = vsel %vm690, %v2105, %v2107
        %v2109 = vrot.slane %v1639, 2
        %v2110 = vrot.slane %v1640, 2
        %v2111 = vsel %vm690, %v2109, %v2110
        %v2112 = vrot.slane %v1641, 2
        %v2113 = vsel %vm690, %v2110, %v2112
        %v2114 = vrot.slane %v1642, 2
        %v2115 = vrot.slane %v1643, 2
        %v2116 = vsel %vm690, %v2114, %v2115
        %v2117 = vrot.slane %v1644, 2
        %v2118 = vsel %vm690, %v2115, %v2117
        %v2135 = vld [vmem:[%s1 + $0x400] sm:$0xff]
        %v2136 = vld [vmem:[%s1 + $0x408] sm:$0xff]
        %v2137 = vld [vmem:[%s1 + $0x410] sm:$0xff]
        %v2138 = vld [vmem:[%s1 + $0x418] sm:$0xff]
        %v2139 = vld [vmem:[%s1 + $0x420] sm:$0xff]
        %v2140 = vld [vmem:[%s1 + $0x428] sm:$0xff]
        %v2141 = vld [vmem:[%s1 + $0x430] sm:$0xff]
        %v2142 = vld [vmem:[%s1 + $0x438] sm:$0xff]
        %v2143 = vld [vmem:[%s1 + $0x440] sm:$0xff]
        %v2144 = vld [vmem:[%s1 + $0x448] sm:$0xff]
        %v2145 = vld [vmem:[%s1 + $0x450] sm:$0xff]
        %v2146 = vld [vmem:[%s1 + $0x458] sm:$0xff]
        %v2147 = vld [vmem:[%s1 + $0x460] sm:$0xff]
        %v2148 = vld [vmem:[%s1 + $0x468] sm:$0xff]
        %v2149 = vld [vmem:[%s1 + $0x470] sm:$0xff]
        %v2150 = vld [vmem:[%s1 + $0x478] sm:$0xff]
        %2151 = vmatprep.subr.mxu0 0.0
        %2152 = vmatpush1.msra.mxu0 %v2150
        %2153 = vmatprep.subr.mxu0 0.0
        %2154 = vmatpush1.msra.mxu0 %v2149
        %2155 = vmatprep.subr.mxu0 0.0
        %2156 = vmatpush1.msra.mxu0 %v2148
        %2157 = vmatprep.subr.mxu0 0.0
        %2158 = vmatpush1.msra.mxu0 %v2147
        %2159 = vmatprep.subr.mxu0 0.0
        %2160 = vmatpush1.msra.mxu0 %v2146
        %2161 = vmatprep.subr.mxu0 0.0
        %2162 = vmatpush1.msra.mxu0 %v2145
        %2163 = vmatprep.subr.mxu0 0.0
        %2164 = vmatpush1.msra.mxu0 %v2144
        %2165 = vmatprep.subr.mxu0 0.0
        %2166 = vmatpush1.msra.mxu0 %v2143
        %2167 = vmatprep.subr.mxu0 0.0
        %2168 = vmatpush1.msra.mxu0 %v2142
        %2169 = vmatprep.subr.mxu0 0.0
        %2170 = vmatpush1.msra.mxu0 %v2141
        %2171 = vmatprep.subr.mxu0 0.0
        %2172 = vmatpush1.msra.mxu0 %v2140
        %2173 = vmatprep.subr.mxu0 0.0
        %2174 = vmatpush1.msra.mxu0 %v2139
        %2175 = vmatprep.subr.mxu0 0.0
        %2176 = vmatpush1.msra.mxu0 %v2138
        %2177 = vmatprep.subr.mxu0 0.0
        %2178 = vmatpush1.msra.mxu0 %v2137
        %2179 = vmatprep.subr.mxu0 0.0
        %2180 = vmatpush1.msra.mxu0 %v2136
        %2181 = vmatprep.subr.mxu0 0.0
        %2182 = vmatpush1.msra.mxu0 %v2135
        %2183 = vmatprep.subr.mxu0 0.0
        %2184 = vmatpush2.msra.mxu0 0.0
        %2185 = vmatprep.subr.mxu0 0.0
        %2186 = vmatpush2.msra.mxu0 0.0
        %2187 = vmatprep.subr.mxu0 0.0
        %2188 = vmatpush2.msra.mxu0 0.0
        %2189 = vmatprep.subr.mxu0 0.0
        %2190 = vmatpush2.msra.mxu0 0.0
        %2191 = vmatprep.subr.mxu0 0.0
        %2192 = vmatpush2.msra.mxu0 0.0
        %2193 = vmatprep.subr.mxu0 0.0
        %2194 = vmatpush2.msra.mxu0 0.0
        %2195 = vmatprep.subr.mxu0 0.0
        %2196 = vmatpush2.msra.mxu0 0.0
        %2197 = vmatprep.subr.mxu0 0.0
        %2198 = vmatpush2.msra.mxu0 0.0
        %2199 = vmatprep.subr.mxu0 0.0
        %2200 = vmatpush2.msra.mxu0 0.0
        %2201 = vmatprep.subr.mxu0 0.0
        %2202 = vmatpush2.msra.mxu0 0.0
        %2203 = vmatprep.subr.mxu0 0.0
        %2204 = vmatpush2.msra.mxu0 0.0
        %2205 = vmatprep.subr.mxu0 0.0
        %2206 = vmatpush2.msra.mxu0 0.0
        %2207 = vmatprep.subr.mxu0 0.0
        %2208 = vmatpush2.msra.mxu0 0.0
        %2209 = vmatprep.subr.mxu0 0.0
        %2210 = vmatpush2.msra.mxu0 0.0
        %2211 = vmatprep.subr.mxu0 0.0
        %2212 = vmatpush2.msra.mxu0 0.0
        %2213 = vmatprep.subr.mxu0 0.0
        %2214 = vmatpush2.msra.mxu0 0.0
        %2215 = vmatprep.mubr.f32.mxu0 0.0
        %2216 = vmatmul.mubr.f32.gmra.mxu0 %v2081
        %v2217 = vpop.f32.mrf.mxu0
        %v2218 = vadd.f32 0.0, %v2217
        %v2219 = vpop.f32.mrf.mxu0
        %2220 = vmatprep.mubr.f32.mxu0 0.0
        %2221 = vmatmul.mubr.f32.gmra.mxu0 %v2083
        %v2222 = vpop.f32.mrf.mxu0
        %v2223 = vadd.f32 0.0, %v2222
        %v2224 = vpop.f32.mrf.mxu0
        %2225 = vmatprep.mubr.f32.mxu0 0.0
        %2226 = vmatmul.mubr.f32.gmra.mxu0 %v2086
        %v2227 = vpop.f32.mrf.mxu0
        %v2228 = vadd.f32 0.0, %v2227
        %v2229 = vpop.f32.mrf.mxu0
        %2230 = vmatprep.mubr.f32.mxu0 0.0
        %2231 = vmatmul.mubr.f32.gmra.mxu0 %v2088
        %v2232 = vpop.f32.mrf.mxu0
        %v2233 = vadd.f32 0.0, %v2232
        %v2234 = vpop.f32.mrf.mxu0
        %2235 = vmatprep.mubr.f32.mxu0 0.0
        %2236 = vmatmul.mubr.f32.gmra.mxu0 %v2091
        %v2237 = vpop.f32.mrf.mxu0
        %v2238 = vadd.f32 0.0, %v2237
        %v2239 = vpop.f32.mrf.mxu0
        %2240 = vmatprep.mubr.f32.mxu0 0.0
        %2241 = vmatmul.mubr.f32.gmra.mxu0 %v2093
        %v2242 = vpop.f32.mrf.mxu0
        %v2243 = vadd.f32 0.0, %v2242
        %v2244 = vpop.f32.mrf.mxu0
        %2245 = vmatprep.mubr.f32.mxu0 0.0
        %2246 = vmatmul.mubr.f32.gmra.mxu0 %v2096
        %v2247 = vpop.f32.mrf.mxu0
        %v2248 = vadd.f32 0.0, %v2247
        %v2249 = vpop.f32.mrf.mxu0
        %2250 = vmatprep.mubr.f32.mxu0 0.0
        %2251 = vmatmul.mubr.f32.gmra.mxu0 %v2098
        %v2252 = vpop.f32.mrf.mxu0
        %v2253 = vadd.f32 0.0, %v2252
        %v2254 = vpop.f32.mrf.mxu0
        %2255 = vmatprep.mubr.f32.mxu0 0.0
        %2256 = vmatmul.mubr.f32.gmra.mxu0 %v2101
        %v2257 = vpop.f32.mrf.mxu0
        %v2258 = vadd.f32 0.0, %v2257
        %v2259 = vpop.f32.mrf.mxu0
        %2260 = vmatprep.mubr.f32.mxu0 0.0
        %2261 = vmatmul.mubr.f32.gmra.mxu0 %v2103
        %v2262 = vpop.f32.mrf.mxu0
        %v2263 = vadd.f32 0.0, %v2262
        %v2264 = vpop.f32.mrf.mxu0
        %2265 = vmatprep.mubr.f32.mxu0 0.0
        %2266 = vmatmul.mubr.f32.gmra.mxu0 %v2106
        %v2267 = vpop.f32.mrf.mxu0
        %v2268 = vadd.f32 0.0, %v2267
        %v2269 = vpop.f32.mrf.mxu0
        %2270 = vmatprep.mubr.f32.mxu0 0.0
        %2271 = vmatmul.mubr.f32.gmra.mxu0 %v2108
        %v2272 = vpop.f32.mrf.mxu0
        %v2273 = vadd.f32 0.0, %v2272
        %v2274 = vpop.f32.mrf.mxu0
        %2275 = vmatprep.mubr.f32.mxu0 0.0
        %2276 = vmatmul.mubr.f32.gmra.mxu0 %v2111
        %v2277 = vpop.f32.mrf.mxu0
        %v2278 = vadd.f32 0.0, %v2277
        %v2279 = vpop.f32.mrf.mxu0
        %2280 = vmatprep.mubr.f32.mxu0 0.0
        %2281 = vmatmul.mubr.f32.gmra.mxu0 %v2113
        %v2282 = vpop.f32.mrf.mxu0
        %v2283 = vadd.f32 0.0, %v2282
        %v2284 = vpop.f32.mrf.mxu0
        %2285 = vmatprep.mubr.f32.mxu0 0.0
        %2286 = vmatmul.mubr.f32.gmra.mxu0 %v2116
        %v2287 = vpop.f32.mrf.mxu0
        %v2288 = vadd.f32 0.0, %v2287
        %v2289 = vpop.f32.mrf.mxu0
        %2290 = vmatprep.mubr.f32.mxu0 0.0
        %2291 = vmatmul.mubr.f32.gmra.mxu0 %v2118
        %v2292 = vpop.f32.mrf.mxu0
        %v2293 = vadd.f32 0.0, %v2292
        %v2294 = vpop.f32.mrf.mxu0
        %2295 = vdwg.mxu0
        %v2296 = vadd.f32 %v2063, %v2218
        %v2297 = vadd.f32 %v2064, %v2223
        %v2298 = vadd.f32 %v2065, %v2228
        %v2299 = vadd.f32 %v2066, %v2233
        %v2300 = vadd.f32 %v2067, %v2238
        %v2301 = vadd.f32 %v2068, %v2243
        %v2302 = vadd.f32 %v2069, %v2248
        %v2303 = vadd.f32 %v2070, %v2253
        %v2304 = vadd.f32 %v2071, %v2258
        %v2305 = vadd.f32 %v2072, %v2263
        %v2306 = vadd.f32 %v2073, %v2268
        %v2307 = vadd.f32 %v2074, %v2273
        %v2308 = vadd.f32 %v2075, %v2278
        %v2309 = vadd.f32 %v2076, %v2283
        %v2310 = vadd.f32 %v2077, %v2288
        %v2311 = vadd.f32 %v2078, %v2293
        %v2312 = vld [vmem:[%s2] sm:$0x1]
        %v2314 = vlaneseq
        %v2315 = vshrl.u32 %v2314, 7
        %v2316 = vsub.s32 0, %v2315
        %v2317 = vrot.slane %v2312, %v2316
        %v2319 = vadd.f32 %v2296, %v2317
        %v2320 = vadd.f32 %v2297, %v2317
        %v2321 = vadd.f32 %v2298, %v2317
        %v2322 = vadd.f32 %v2299, %v2317
        %v2323 = vadd.f32 %v2300, %v2317
        %v2324 = vadd.f32 %v2301, %v2317
        %v2325 = vadd.f32 %v2302, %v2317
        %v2326 = vadd.f32 %v2303, %v2317
        %v2327 = vadd.f32 %v2304, %v2317
        %v2328 = vadd.f32 %v2305, %v2317
        %v2329 = vadd.f32 %v2306, %v2317
        %v2330 = vadd.f32 %v2307, %v2317
        %v2331 = vadd.f32 %v2308, %v2317
        %v2332 = vadd.f32 %v2309, %v2317
        %v2333 = vadd.f32 %v2310, %v2317
        %v2334 = vadd.f32 %v2311, %v2317
        %v2335 = vmax.f32 %v2319, 0.0
        %v2336 = vmax.f32 %v2320, 0.0
        %v2337 = vmax.f32 %v2321, 0.0
        %v2338 = vmax.f32 %v2322, 0.0
        %v2339 = vmax.f32 %v2323, 0.0
        %v2340 = vmax.f32 %v2324, 0.0
        %v2341 = vmax.f32 %v2325, 0.0
        %v2342 = vmax.f32 %v2326, 0.0
        %v2343 = vmax.f32 %v2327, 0.0
        %v2344 = vmax.f32 %v2328, 0.0
        %v2345 = vmax.f32 %v2329, 0.0
        %v2346 = vmax.f32 %v2330, 0.0
        %v2347 = vmax.f32 %v2331, 0.0
        %v2348 = vmax.f32 %v2332, 0.0
        %v2349 = vmax.f32 %v2333, 0.0
        %v2350 = vmax.f32 %v2334, 0.0
        %2351 = vst [vmem:[%s237] sm:$0xff] %v2335
        %2352 = vst [vmem:[%s237 + $0x8] sm:$0xff] %v2336
        %2353 = vst [vmem:[%s237 + $0x10] sm:$0xff] %v2337
        %2354 = vst [vmem:[%s237 + $0x18] sm:$0xff] %v2338
        %2355 = vst [vmem:[%s237 + $0x20] sm:$0xff] %v2339
        %2356 = vst [vmem:[%s237 + $0x28] sm:$0xff] %v2340
        %2357 = vst [vmem:[%s237 + $0x30] sm:$0xff] %v2341
        %2358 = vst [vmem:[%s237 + $0x38] sm:$0xff] %v2342
        %2359 = vst [vmem:[%s237 + $0x40] sm:$0xff] %v2343
        %2360 = vst [vmem:[%s237 + $0x48] sm:$0xff] %v2344
        %2361 = vst [vmem:[%s237 + $0x50] sm:$0xff] %v2345
        %2362 = vst [vmem:[%s237 + $0x58] sm:$0xff] %v2346
        %2363 = vst [vmem:[%s237 + $0x60] sm:$0xff] %v2347
        %2364 = vst [vmem:[%s237 + $0x68] sm:$0xff] %v2348
        %2365 = vst [vmem:[%s237 + $0x70] sm:$0xff] %v2349
        %2366 = vst [vmem:[%s237 + $0x78] sm:$0xff] %v2350
        %p2367 = scmp.eq.s32.totalorder %s28, 0
        // Predicated region
        $region33: #{tpu_custom_call.1} parent=31 // pred_check
          %p2368 = pneg %p2367
        $region34: #{tpu_custom_call.1} parent=31 // pred_check_branch
          %2370 = sbr.rel (%p2368) target = $region36
        $region35: #{tpu_custom_call.1} parent=31 // pred_region
          %2371 = vst [vmem:[%s244] sm:$0xff] 0.0
          %2372 = vst [vmem:[%s251] sm:$0xff] 0.0
        $region36: #{tpu_custom_call.1} parent=31 // pred_fallthru
          _
        %v2373 = vadd.f32 %v2335, %v2336
        %v2374 = vadd.f32 %v2373, %v2337
        %v2375 = vadd.f32 %v2374, %v2338
        %v2376 = vadd.f32 %v2375, %v2339
        %v2377 = vadd.f32 %v2376, %v2340
        %v2378 = vadd.f32 %v2377, %v2341
        %v2379 = vadd.f32 %v2378, %v2342
        %v2380 = vadd.f32 %v2379, %v2343
        %v2381 = vadd.f32 %v2380, %v2344
        %v2382 = vadd.f32 %v2381, %v2345
        %v2383 = vadd.f32 %v2382, %v2346
        %v2384 = vadd.f32 %v2383, %v2347
        %v2385 = vadd.f32 %v2384, %v2348
        %v2386 = vadd.f32 %v2385, %v2349
        %v2387 = vadd.f32 %v2386, %v2350
        %v2388 = vrot.slane %v2387, 4
        %v2389 = vadd.f32 %v2387, %v2388
        %v2390 = vrot.slane %v2389, 2
        %v2391 = vadd.f32 %v2389, %v2390
        %v2392 = vrot.slane %v2391, 1
        %v2393 = vadd.f32 %v2391, %v2392
        %v2394 = vmul.f32 %v2335, %v2335
        %v2395 = vmul.f32 %v2336, %v2336
        %v2396 = vmul.f32 %v2337, %v2337
        %v2397 = vmul.f32 %v2338, %v2338
        %v2398 = vmul.f32 %v2339, %v2339
        %v2399 = vmul.f32 %v2340, %v2340
        %v2400 = vmul.f32 %v2341, %v2341
        %v2401 = vmul.f32 %v2342, %v2342
        %v2402 = vmul.f32 %v2343, %v2343
        %v2403 = vmul.f32 %v2344, %v2344
        %v2404 = vmul.f32 %v2345, %v2345
        %v2405 = vmul.f32 %v2346, %v2346
        %v2406 = vmul.f32 %v2347, %v2347
        %v2407 = vmul.f32 %v2348, %v2348
        %v2408 = vmul.f32 %v2349, %v2349
        %v2409 = vmul.f32 %v2350, %v2350
        %v2410 = vadd.f32 %v2394, %v2395
        %v2411 = vadd.f32 %v2410, %v2396
        %v2412 = vadd.f32 %v2411, %v2397
        %v2413 = vadd.f32 %v2412, %v2398
        %v2414 = vadd.f32 %v2413, %v2399
        %v2415 = vadd.f32 %v2414, %v2400
        %v2416 = vadd.f32 %v2415, %v2401
        %v2417 = vadd.f32 %v2416, %v2402
        %v2418 = vadd.f32 %v2417, %v2403
        %v2419 = vadd.f32 %v2418, %v2404
        %v2420 = vadd.f32 %v2419, %v2405
        %v2421 = vadd.f32 %v2420, %v2406
        %v2422 = vadd.f32 %v2421, %v2407
        %v2423 = vadd.f32 %v2422, %v2408
        %v2424 = vadd.f32 %v2423, %v2409
        %v2425 = vrot.slane %v2424, 4
        %v2426 = vadd.f32 %v2424, %v2425
        %v2427 = vrot.slane %v2426, 2
        %v2428 = vadd.f32 %v2426, %v2427
        %v2429 = vrot.slane %v2428, 1
        %v2430 = vadd.f32 %v2428, %v2429
        %v2431 = vld [vmem:[%s244] sm:$0xff]
        %v2432 = vadd.f32 %v2431, %v2393
        %2433 = vst [vmem:[%s244] sm:$0xff] %v2432
        %v2434 = vld [vmem:[%s251] sm:$0xff]
        %v2435 = vadd.f32 %v2434, %v2430
        %2436 = vst [vmem:[%s251] sm:$0xff] %v2435
        %s2437 = sand.u32 %s115, 1
        %s2438 = scalar_lea.sflag [#allocation3], %s2437
        %s2439 = sand.u32 %s115, 1
        %s2440 = smul.addr %s2439, 128
        %s2441 = scalar_lea.vmem [#allocation2], %s2440
        %s2442 = sand.u32 %s23, 1
        %s2443 = scalar_lea.sflag [#allocation5], %s2442
        %s2444 = sand.u32 %s141, 1
        %s2445 = smul.addr %s2444, 8
        %s2446 = scalar_lea.vmem [#allocation4], %s2445
        %s2447 = sand.u32 %s23, 1
        %s2448 = scalar_lea.sflag [#allocation5], %s2447
        %s2449 = sand.u32 %s167, 1
        %s2450 = smul.addr %s2449, 8
        %s2451 = scalar_lea.vmem [#allocation6], %s2450
        // Predicated region
        $region37: #{tpu_custom_call.1} parent=31 // pred_check
          %p2452 = pneg %p125
        $region38: #{tpu_custom_call.1} parent=31 // pred_check_branch
          %2454 = sbr.rel (%p2452) target = $region40
        $region39: #{tpu_custom_call.1} parent=31 // pred_region
          %s2455 = smul.u32 %s27, 2
          %s2456 = sadd.s32 %s2455, %s28
          %s2457 = smul.u32 16, %s2456
          %s2459 = ssub.s32 2048, 2048
          %2460 = vsyncadd %s2438, %s2459
          %s2461 = smul.addr %s2457, 128
          %s2462 = scalar_lea.hbm %s3, %s2461
          %s2463 = sshll.u32 %s2441, 4
          %s2464 = int_to_ptr.vmem [resolvable:$true] %s2463
          %2469 = dma.vmem_to_hbm [thread:$0]  %s2464, 2048, %s2462, %s2438, 128, 128, 8
        $region40: #{tpu_custom_call.1} parent=31 // pred_fallthru
          _
        // Predicated region
        $region41: #{tpu_custom_call.1} parent=31 // pred_check
          %p2470 = pneg %p151
        $region42: #{tpu_custom_call.1} parent=31 // pred_check_branch
          %2472 = sbr.rel (%p2470) target = $region44
        $region43: #{tpu_custom_call.1} parent=31 // pred_region
          %s2474 = ssub.s32 128, 128
          %2475 = vsyncadd %s2443, %s2474
          %s2476 = smul.addr %s27, 128
          %s2477 = scalar_lea.hbm %s4, %s2476
          %s2479 = sshll.u32 %s2446, 4
          %s2480 = int_to_ptr.vmem [resolvable:$true] %s2479
          %2482 = dma.vmem_to_hbm [thread:$0]  %s2480, 128, %s2477, %s2443
        $region44: #{tpu_custom_call.1} parent=31 // pred_fallthru
          _
        // Predicated region
        $region45: #{tpu_custom_call.1} parent=31 // pred_check
          %p2483 = pneg %p177
        $region46: #{tpu_custom_call.1} parent=31 // pred_check_branch
          %2485 = sbr.rel (%p2483) target = $region48
        $region47: #{tpu_custom_call.1} parent=31 // pred_region
          %s2487 = ssub.s32 128, 128
          %2488 = vsyncadd %s2448, %s2487
          %s2489 = smul.addr %s27, 128
          %s2490 = scalar_lea.hbm %s5, %s2489
          %s2492 = sshll.u32 %s2451, 4
          %s2493 = int_to_ptr.vmem [resolvable:$true] %s2492
          %2495 = dma.vmem_to_hbm [thread:$0]  %s2493, 128, %s2490, %s2448
        $region48: #{tpu_custom_call.1} parent=31 // pred_fallthru
          _
      $region32: #{tpu_custom_call.1} parent=5 // pred_fallthru
        _
      %p2496 = scmp.le.s32.totalorder 2, %s18
      // Predicated region
      $region49: #{tpu_custom_call.1} parent=5 // pred_check
        %p2497 = pneg %p2496
      $region50: #{tpu_custom_call.1} parent=5 // pred_check_branch
        %2499 = sbr.rel (%p2497) target = $region52
      $region51: #{tpu_custom_call.1} parent=5 // pred_region
        %s2500 = ssub.s32 %s18, 2
        // Predicated region
        $region53: #{tpu_custom_call.1} parent=51 // pred_check
          %p2501 = pneg %p131
        $region54: #{tpu_custom_call.1} parent=51 // pred_check_branch
          %2503 = sbr.rel (%p2501) target = $region56
        $region55: #{tpu_custom_call.1} parent=51 // pred_region
          %s2504 = sand.u32 %s116, 1
          %s2505 = scalar_lea.sflag [#allocation3], %s2504
          %s2506 = sand.u32 %s116, 1
          %s2507 = smul.addr %s2506, 128
          %s2508 = scalar_lea.vmem [#allocation2], %s2507
          %2509 = dma.done %s2505, 2048
        $region56: #{tpu_custom_call.1} parent=51 // pred_fallthru
          _
        // Predicated region
        $region57: #{tpu_custom_call.1} parent=51 // pred_check
          %p2510 = pneg %p157
        $region58: #{tpu_custom_call.1} parent=51 // pred_check_branch
          %2512 = sbr.rel (%p2510) target = $region60
        $region59: #{tpu_custom_call.1} parent=51 // pred_region
          %s2513 = sand.u32 %s24, 1
          %s2514 = scalar_lea.sflag [#allocation5], %s2513
          %s2515 = sand.u32 %s142, 1
          %s2516 = smul.addr %s2515, 8
          %s2517 = scalar_lea.vmem [#allocation4], %s2516
          %2518 = dma.done %s2514, 128
        $region60: #{tpu_custom_call.1} parent=51 // pred_fallthru
          _
        // Predicated region
        $region61: #{tpu_custom_call.1} parent=51 // pred_check
          %p2519 = pneg %p183
        $region62: #{tpu_custom_call.1} parent=51 // pred_check_branch
          %2521 = sbr.rel (%p2519) target = $region64
        $region63: #{tpu_custom_call.1} parent=51 // pred_region
          %s2522 = sand.u32 %s24, 1
          %s2523 = scalar_lea.sflag [#allocation5], %s2522
          %s2524 = sand.u32 %s168, 1
          %s2525 = smul.addr %s2524, 8
          %s2526 = scalar_lea.vmem [#allocation6], %s2525
          %2527 = dma.done %s2523, 128
        $region64: #{tpu_custom_call.1} parent=51 // pred_fallthru
          _
      $region52: #{tpu_custom_call.1} parent=5 // pred_fallthru
        _
    $region6: #{tpu_custom_call.1} parent=1 // loop_footer
      %s22 = sadd.s32 1, %s18
    $region7: #{tpu_custom_call.1} parent=1 // loop_footer_branch
      %17 = sbr.rel target = $region3
    $region8: #{tpu_custom_call.1} parent=1 // loop_exit
      _
    %2528 = vsyncpa [#allocation3], 1
    %s2529 = scalar_lea.sflag [#allocation3], 1
    %2530 = vsyncpa %s2529, 1
    %2531 = vsyncpa [#allocation5], 1
    %s2532 = scalar_lea.sflag [#allocation5], 1
    %2533 = vsyncpa %s2532, 1

</llo_original>
